<compile_context>
chip_gen: v7x
topology: tpu7x:2x2x1
jax: 0.10.0
libtpu: 0.0.40
codegen_flags: <defaults>
</compile_context>

<pallas_src>
import math

import jax
import jax.numpy as jnp
from jax.experimental import pallas as pl
from jax.experimental.pallas import tpu as pltpu

HFULL = 192.0
WFULL = 288.0
SIGMA_FULL = 4.0


def _pick_block_batch(B, max_bt=8):
    """Largest divisor of B that is <= max_bt and (if possible) keeps >= 2 grid steps."""
    divs = [d for d in range(1, min(max_bt, B) + 1) if B % d == 0]
    two_step = [d for d in divs if B // d >= 2]
    return max(two_step) if two_step else max(divs)


def _make_fused_kernel(scale_dims, n_gt, n_w, bt):
    """scale_dims: tuple of (H, W) per pyramid scale (static)."""
    consts = []
    for (H, W) in scale_dims:
        sigma = SIGMA_FULL / math.sqrt(HFULL ** 2 + WFULL ** 2) * math.sqrt(H * H + W * W)
        consts.append(
            (float(H), float(W), H * W,
             1.0 / (2.0 * sigma * sigma),
             1.0 / float(n_gt * n_w * H * W))
        )

    def kernel(tgt_ref, *refs):
        pi_refs = refs[:-1]        # one ref per scale, each block (Bt, N_w, HW_s)
        out_ref = refs[-1]         # (1, 1, 128) lane-dense per-step partial

        total = jnp.float32(0.0)
        for s, (Hf, Wf, HW, inv2s2, inv_count) in enumerate(consts):
            pi_ref = pi_refs[s]

            # ---- flat spatial coords + hoisted quadratic base (scale-level, g/b invariant) ----
            kf = jax.lax.broadcasted_iota(jnp.int32, (1, HW), 1).astype(jnp.float32)
            ys = jnp.floor((kf + 0.5) / Wf)          # robust integer row (HW << 2^24)
            xs = kf - ys * Wf                        # exact column
            two_i = 2.0 * inv2s2
            base = -(ys * ys + xs * xs) * inv2s2     # (1, HW)
            ys2 = ys * two_i                         # pre-scaled coordinate rows
            xs2 = xs * two_i

            def bi_body(bi, acc):
                # ---- predicted log-softmax over HW: computed ONCE per (b, scale) ----
                pi = pi_ref[bi].astype(jnp.float32)               # (N_w, HW)
                z = pi - jnp.max(pi, axis=-1, keepdims=True)
                e = jnp.exp(z)
                sumexp = jnp.sum(e, axis=-1, keepdims=True)       # (N_w, 1)
                log_p = z - jnp.log(sumexp)
                # row-scalar reciprocal on the EUP; clamp keeps p <= 1 so log1p(-p) is safe
                p = jnp.minimum(e * pl.reciprocal(sumexp, approx=True), 1.0)
                cl_p = jnp.maximum(log_p, -100.0)                 # torch BCE clamp
                cl_1mp = jnp.maximum(jnp.log1p(-p), -100.0)
                d = cl_p - cl_1mp                                 # (N_w, HW)
                s0 = jnp.sum(cl_1mp)                              # scalar

                def g_body(g, ssum):
                    mu = tgt_ref[bi, g]                           # (N_w, 2) f32
                    mu_x = mu[:, 0:1] * Wf                        # (N_w, 1) col mean
                    mu_y = mu[:, 1:2] * Hf                        # (N_w, 1) row mean
                    c = -(mu_x * mu_x + mu_y * mu_y) * inv2s2     # keeps logits <= 0
                    logit_t = base + mu_y * ys2 + mu_x * xs2 + c  # (N_w, HW)
                    t_exp = jnp.exp(logit_t)                      # no max pass needed
                    num = jnp.sum(t_exp * d, axis=-1, keepdims=True)   # (N_w, 1)
                    den = jnp.sum(t_exp, axis=-1, keepdims=True)       # (N_w, 1)
                    return ssum + jnp.sum(num * pl.reciprocal(den, approx=True))

                ssum = jax.lax.fori_loop(0, n_gt, g_body, jnp.float32(0.0), unroll=True)
                # sum over (g, n, hw) of bce for this b / (N_gt*N_w*HW); /B happens in JAX
                return acc + (-ssum - n_gt * s0) * inv_count

            # fori_loop (not a Python loop) to bound vreg live ranges across the Bt slices
            total = jax.lax.fori_loop(0, bt, bi_body, total, unroll=1)

        lane = jax.lax.broadcasted_iota(jnp.int32, (1, 1, 128), 2)
        out_ref[...] = jnp.where(lane == 0, total, jnp.float32(0.0))

    return kernel


def _pi_loss_impl(pis_per_scale, targets):
    """pis_per_scale: list of [B, N_w, H_s, W_s] logits; targets: [B, N_gt, N_w, 2] in [0,1], wh."""
    B, N_gt, N_w, _ = targets.shape
    scale_dims = tuple((int(pi.shape[2]), int(pi.shape[3])) for pi in pis_per_scale)

    bt = _pick_block_batch(B)
    nsteps = B // bt

    # one (H,W)->HW relayout per pi per call; see TODO(synk) above.
    pi_flats = [
        pi.reshape(B, N_w, h * w) for pi, (h, w) in zip(pis_per_scale, scale_dims)
    ]

    in_specs = [pl.BlockSpec((bt, N_gt, N_w, 2), lambda b: (b, 0, 0, 0))]
    for (h, w) in scale_dims:
        in_specs.append(pl.BlockSpec((bt, N_w, h * w), lambda b: (b, 0, 0)))

    out = pl.pallas_call(
        _make_fused_kernel(scale_dims, N_gt, N_w, bt),
        out_shape=jax.ShapeDtypeStruct((nsteps, 1, 128), jnp.float32),
        grid_spec=pltpu.PrefetchScalarGridSpec(
            num_scalar_prefetch=0,
            grid=(nsteps,),
            in_specs=in_specs,
            out_specs=pl.BlockSpec((1, 1, 128), lambda b: (b, 0, 0)),
        ),
        compiler_params=pltpu.CompilerParams(dimension_semantics=("parallel",)),
    )(targets.astype(jnp.float32), *pi_flats)

    # binary_cross_entropy reduction='mean': per-scale sums were already divided by
    # N_gt*N_w*HW_s inside the kernel; only /B remains.
    return jnp.sum(out) / jnp.float32(B)


pi_loss = jax.jit(_pi_loss_impl)


# ------------------------- pure-JAX reference (for sanity) -------------------------
def _ref_pi_loss(pis_per_scale, targets):
    B, N_gt, N_w, _ = targets.shape
    total = jnp.float32(0.0)
    for pi in pis_per_scale:
        _, _, H, W = pi.shape
        HW = H * W
        sigma = SIGMA_FULL / math.sqrt(HFULL ** 2 + WFULL ** 2) * math.sqrt(H ** 2 + W ** 2)
        mu_y = targets[..., 1] * H  # (B, N_gt, N_w)
        mu_x = targets[..., 0] * W
        ii = jnp.arange(H, dtype=jnp.float32)
        jj = jnp.arange(W, dtype=jnp.float32)
        d2 = (ii[:, None] - mu_y[..., None, None]) ** 2 + (
            jj[None, :] - mu_x[..., None, None]
        ) ** 2  # (B, N_gt, N_w, H, W)
        logit = -d2 / (2.0 * sigma * sigma)
        t = jax.nn.softmax(logit.reshape(B, N_gt, N_w, HW), axis=-1)
        p = jax.nn.softmax(pi.reshape(B, 1, N_w, HW).astype(jnp.float32), axis=-1)
        p = jnp.broadcast_to(p, t.shape)
        log_p = jnp.maximum(jnp.log(p), -100.0)
        log_1mp = jnp.maximum(jnp.log1p(-p), -100.0)
        total = total + jnp.mean(-(t * log_p + (1.0 - t) * log_1mp))
    return total


if __name__ == "__main__":
    key = jax.random.PRNGKey(0)
    k_t, k_p1, k_p2 = jax.random.split(key, 3)

    B, N_gt, N_w = 4, 3, 8          # B=4 -> Bt=2, grid=(2,): exercises the batched path
    # targets in [0,1], wh format (first width)
    targets = jax.random.uniform(k_t, (B, N_gt, N_w, 2), dtype=jnp.float32)

    # two pyramid scales consistent with Hfull=192, Wfull=288:
    #   H=24 -> downsample 8 -> (24, 36);  H=12 -> downsample 16 -> (12, 18)
    pi_s1 = jax.random.normal(k_p1, (B, N_w, 24, 36), dtype=jnp.float32)
    pi_s2 = jax.random.normal(k_p2, (B, N_w, 12, 18), dtype=jnp.float32)
    pis_per_scale = [pi_s1, pi_s2]

    loss = jax.block_until_ready(pi_loss(pis_per_scale, targets))
    ref = jax.block_until_ready(_ref_pi_loss(pis_per_scale, targets))
    assert jnp.allclose(loss, ref, rtol=2e-3, atol=1e-4), (loss, ref)

    print("KERNEL_OK")
</pallas_src>

<mosaic_0001>
module attributes {stable_mosaic.version = 11 : i64} {
  func.func @kernel(%arg0: i32, %arg1: memref<2x3x8x2xf32, #tpu.memory_space<vmem>>, %arg2: memref<2x8x864xf32, #tpu.memory_space<vmem>>, %arg3: memref<2x8x216xf32, #tpu.memory_space<vmem>>, %arg4: memref<1x1x128xf32, #tpu.memory_space<vmem>>) attributes {dimension_semantics = [#tpu.dimension_semantics<parallel>], iteration_bounds = array<i64: 2>, scalar_prefetch = 0 : i64, scratch_operands = 0 : i64, tpu.core_type = #tpu.core_type<tc>, window_params = [{transform_indices = @transform_0, window_bounds = array<i64: 2, 3, 8, 2>}, {transform_indices = @transform_1, window_bounds = array<i64: 2, 8, 864>}, {transform_indices = @transform_2, window_bounds = array<i64: 2, 8, 216>}, {transform_indices = @transform_3, window_bounds = array<i64: 1, 1, 128>}]} {
    %0 = tpu.iota {dimensions = array<i32: 1>} : vector<1x864xi32>
    %1 = arith.sitofp %0 : vector<1x864xi32> to vector<1x864xf32>
    %cst = arith.constant 5.000000e-01 : f32
    %2 = vector.broadcast %cst : f32 to vector<1x864xf32>
    %3 = arith.addf %1, %2 : vector<1x864xf32>
    %cst_0 = arith.constant 3.600000e+01 : f32
    %4 = vector.broadcast %cst_0 : f32 to vector<1x864xf32>
    %5 = arith.divf %3, %4 : vector<1x864xf32>
    %6 = math.floor %5 : vector<1x864xf32>
    %cst_1 = arith.constant 3.600000e+01 : f32
    %7 = vector.broadcast %cst_1 : f32 to vector<1x864xf32>
    %8 = arith.mulf %6, %7 : vector<1x864xf32>
    %9 = arith.subf %1, %8 : vector<1x864xf32>
    %10 = arith.mulf %6, %6 : vector<1x864xf32>
    %11 = arith.mulf %9, %9 : vector<1x864xf32>
    %12 = arith.addf %10, %11 : vector<1x864xf32>
    %cst_2 = arith.constant 0.000000e+00 : f32
    %13 = vector.broadcast %cst_2 : f32 to vector<1x864xf32>
    %14 = arith.subf %13, %12 : vector<1x864xf32>
    %cst_3 = arith.constant 2.000000e+00 : f32
    %15 = vector.broadcast %cst_3 : f32 to vector<1x864xf32>
    %16 = arith.mulf %14, %15 : vector<1x864xf32>
    %cst_4 = arith.constant 4.000000e+00 : f32
    %17 = vector.broadcast %cst_4 : f32 to vector<1x864xf32>
    %18 = arith.mulf %6, %17 : vector<1x864xf32>
    %cst_5 = arith.constant 4.000000e+00 : f32
    %19 = vector.broadcast %cst_5 : f32 to vector<1x864xf32>
    %20 = arith.mulf %9, %19 : vector<1x864xf32>
    %cst_6 = arith.constant 0.000000e+00 : f32
    %c0_i32 = arith.constant 0 : i32
    %c2_i32 = arith.constant 2 : i32
    %21 = arith.addi %c0_i32, %c2_i32 : i32
    %c1_i32 = arith.constant 1 : i32
    %22 = scf.for %arg5 = %c0_i32 to %21 step %c1_i32 iter_args(%arg6 = %cst_6) -> (f32)  : i32 {
      %53 = arith.index_cast %arg5 : i32 to index
      %c0_23 = arith.constant 0 : index
      %c0_24 = arith.constant 0 : index
      %54 = vector.load %arg2[%53, %c0_23, %c0_24] : memref<2x8x864xf32, #tpu.memory_space<vmem>>, vector<1x8x864xf32>
      %55 = vector.shape_cast %54 : vector<1x8x864xf32> to vector<8x864xf32>
      %cst_25 = arith.constant dense<0xFF800000> : vector<8xf32>
      %56 = vector.multi_reduction <maximumf>, %55, %cst_25 [1] : vector<8x864xf32> to vector<8xf32>
      %57 = vector.shape_cast %56 : vector<8xf32> to vector<8x1xf32>
      %58 = vector.broadcast %57 : vector<8x1xf32> to vector<8x864xf32>
      %59 = arith.subf %55, %58 : vector<8x864xf32>
      %60 = math.exp %59 : vector<8x864xf32>
      %cst_26 = arith.constant dense<0.000000e+00> : vector<8xf32>
      %61 = vector.multi_reduction <add>, %60, %cst_26 [1] : vector<8x864xf32> to vector<8xf32>
      %62 = vector.shape_cast %61 : vector<8xf32> to vector<8x1xf32>
      %63 = math.log %62 : vector<8x1xf32>
      %64 = vector.broadcast %63 : vector<8x1xf32> to vector<8x864xf32>
      %65 = arith.subf %59, %64 : vector<8x864xf32>
      %66 = tpu.reciprocal %62 {approx = true} : vector<8x1xf32> -> vector<8x1xf32>
      %67 = vector.broadcast %66 : vector<8x1xf32> to vector<8x864xf32>
      %68 = arith.mulf %60, %67 : vector<8x864xf32>
      %cst_27 = arith.constant 1.000000e+00 : f32
      %69 = vector.broadcast %cst_27 : f32 to vector<8x864xf32>
      %70 = arith.minimumf %68, %69 : vector<8x864xf32>
      %cst_28 = arith.constant -1.000000e+02 : f32
      %71 = vector.broadcast %cst_28 : f32 to vector<8x864xf32>
      %72 = arith.maximumf %65, %71 : vector<8x864xf32>
      %cst_29 = arith.constant 0.000000e+00 : f32
      %73 = vector.broadcast %cst_29 : f32 to vector<8x864xf32>
      %74 = arith.subf %73, %70 : vector<8x864xf32>
      %75 = math.log1p %74 : vector<8x864xf32>
      %cst_30 = arith.constant -1.000000e+02 : f32
      %76 = vector.broadcast %cst_30 : f32 to vector<8x864xf32>
      %77 = arith.maximumf %75, %76 : vector<8x864xf32>
      %78 = arith.subf %72, %77 : vector<8x864xf32>
      %79 = vector.shape_cast %77 : vector<8x864xf32> to vector<1x8x864xf32>
      %cst_31 = arith.constant dense<0.000000e+00> : vector<1xf32>
      %80 = vector.multi_reduction <add>, %79, %cst_31 [1, 2] : vector<1x8x864xf32> to vector<1xf32>
      %81 = vector.shape_cast %80 : vector<1xf32> to vector<1x1x1xf32>
      %82 = vector.extract %81[0, 0, 0] : f32 from vector<1x1x1xf32>
      %cst_32 = arith.constant 0.000000e+00 : f32
      %c0_i32_33 = arith.constant 0 : i32
      %83 = arith.index_cast %arg5 : i32 to index
      %84 = arith.index_cast %c0_i32_33 : i32 to index
      %c0_34 = arith.constant 0 : index
      %c0_35 = arith.constant 0 : index
      %85 = vector.load %arg1[%83, %84, %c0_34, %c0_35] : memref<2x3x8x2xf32, #tpu.memory_space<vmem>>, vector<1x1x8x2xf32>
      %86 = vector.shape_cast %85 : vector<1x1x8x2xf32> to vector<8x2xf32>
      %87 = vector.extract_strided_slice %86 {offsets = [0, 0], sizes = [8, 1], strides = [1, 1]} : vector<8x2xf32> to vector<8x1xf32>
      %cst_36 = arith.constant 3.600000e+01 : f32
      %88 = vector.broadcast %cst_36 : f32 to vector<8x1xf32>
      %89 = arith.mulf %87, %88 : vector<8x1xf32>
      %90 = vector.extract_strided_slice %86 {offsets = [0, 1], sizes = [8, 1], strides = [1, 1]} : vector<8x2xf32> to vector<8x1xf32>
      %cst_37 = arith.constant 2.400000e+01 : f32
      %91 = vector.broadcast %cst_37 : f32 to vector<8x1xf32>
      %92 = arith.mulf %90, %91 : vector<8x1xf32>
      %93 = arith.mulf %89, %89 : vector<8x1xf32>
      %94 = arith.mulf %92, %92 : vector<8x1xf32>
      %95 = arith.addf %93, %94 : vector<8x1xf32>
      %cst_38 = arith.constant 0.000000e+00 : f32
      %96 = vector.broadcast %cst_38 : f32 to vector<8x1xf32>
      %97 = arith.subf %96, %95 : vector<8x1xf32>
      %cst_39 = arith.constant 2.000000e+00 : f32
      %98 = vector.broadcast %cst_39 : f32 to vector<8x1xf32>
      %99 = arith.mulf %97, %98 : vector<8x1xf32>
      %100 = vector.broadcast %92 : vector<8x1xf32> to vector<8x864xf32>
      %101 = vector.broadcast %18 : vector<1x864xf32> to vector<8x864xf32>
      %102 = arith.mulf %100, %101 : vector<8x864xf32>
      %103 = vector.broadcast %16 : vector<1x864xf32> to vector<8x864xf32>
      %104 = arith.addf %103, %102 : vector<8x864xf32>
      %105 = vector.broadcast %89 : vector<8x1xf32> to vector<8x864xf32>
      %106 = vector.broadcast %20 : vector<1x864xf32> to vector<8x864xf32>
      %107 = arith.mulf %105, %106 : vector<8x864xf32>
      %108 = arith.addf %104, %107 : vector<8x864xf32>
      %109 = vector.broadcast %99 : vector<8x1xf32> to vector<8x864xf32>
      %110 = arith.addf %108, %109 : vector<8x864xf32>
      %111 = math.exp %110 : vector<8x864xf32>
      %112 = arith.mulf %111, %78 : vector<8x864xf32>
      %cst_40 = arith.constant dense<0.000000e+00> : vector<8xf32>
      %113 = vector.multi_reduction <add>, %112, %cst_40 [1] : vector<8x864xf32> to vector<8xf32>
      %114 = vector.shape_cast %113 : vector<8xf32> to vector<8x1xf32>
      %cst_41 = arith.constant dense<0.000000e+00> : vector<8xf32>
      %115 = vector.multi_reduction <add>, %111, %cst_41 [1] : vector<8x864xf32> to vector<8xf32>
      %116 = vector.shape_cast %115 : vector<8xf32> to vector<8x1xf32>
      %117 = tpu.reciprocal %116 {approx = true} : vector<8x1xf32> -> vector<8x1xf32>
      %118 = arith.mulf %114, %117 : vector<8x1xf32>
      %119 = vector.shape_cast %118 : vector<8x1xf32> to vector<1x8x1xf32>
      %cst_42 = arith.constant dense<0.000000e+00> : vector<1xf32>
      %120 = vector.multi_reduction <add>, %119, %cst_42 [1, 2] : vector<1x8x1xf32> to vector<1xf32>
      %121 = vector.shape_cast %120 : vector<1xf32> to vector<1x1x1xf32>
      %122 = vector.extract %121[0, 0, 0] : f32 from vector<1x1x1xf32>
      %123 = arith.addf %cst_32, %122 : f32
      %c1_i32_43 = arith.constant 1 : i32
      %124 = arith.index_cast %arg5 : i32 to index
      %125 = arith.index_cast %c1_i32_43 : i32 to index
      %c0_44 = arith.constant 0 : index
      %c0_45 = arith.constant 0 : index
      %126 = vector.load %arg1[%124, %125, %c0_44, %c0_45] : memref<2x3x8x2xf32, #tpu.memory_space<vmem>>, vector<1x1x8x2xf32>
      %127 = vector.shape_cast %126 : vector<1x1x8x2xf32> to vector<8x2xf32>
      %128 = vector.extract_strided_slice %127 {offsets = [0, 0], sizes = [8, 1], strides = [1, 1]} : vector<8x2xf32> to vector<8x1xf32>
      %cst_46 = arith.constant 3.600000e+01 : f32
      %129 = vector.broadcast %cst_46 : f32 to vector<8x1xf32>
      %130 = arith.mulf %128, %129 : vector<8x1xf32>
      %131 = vector.extract_strided_slice %127 {offsets = [0, 1], sizes = [8, 1], strides = [1, 1]} : vector<8x2xf32> to vector<8x1xf32>
      %cst_47 = arith.constant 2.400000e+01 : f32
      %132 = vector.broadcast %cst_47 : f32 to vector<8x1xf32>
      %133 = arith.mulf %131, %132 : vector<8x1xf32>
      %134 = arith.mulf %130, %130 : vector<8x1xf32>
      %135 = arith.mulf %133, %133 : vector<8x1xf32>
      %136 = arith.addf %134, %135 : vector<8x1xf32>
      %cst_48 = arith.constant 0.000000e+00 : f32
      %137 = vector.broadcast %cst_48 : f32 to vector<8x1xf32>
      %138 = arith.subf %137, %136 : vector<8x1xf32>
      %cst_49 = arith.constant 2.000000e+00 : f32
      %139 = vector.broadcast %cst_49 : f32 to vector<8x1xf32>
      %140 = arith.mulf %138, %139 : vector<8x1xf32>
      %141 = vector.broadcast %133 : vector<8x1xf32> to vector<8x864xf32>
      %142 = vector.broadcast %18 : vector<1x864xf32> to vector<8x864xf32>
      %143 = arith.mulf %141, %142 : vector<8x864xf32>
      %144 = vector.broadcast %16 : vector<1x864xf32> to vector<8x864xf32>
      %145 = arith.addf %144, %143 : vector<8x864xf32>
      %146 = vector.broadcast %130 : vector<8x1xf32> to vector<8x864xf32>
      %147 = vector.broadcast %20 : vector<1x864xf32> to vector<8x864xf32>
      %148 = arith.mulf %146, %147 : vector<8x864xf32>
      %149 = arith.addf %145, %148 : vector<8x864xf32>
      %150 = vector.broadcast %140 : vector<8x1xf32> to vector<8x864xf32>
      %151 = arith.addf %149, %150 : vector<8x864xf32>
      %152 = math.exp %151 : vector<8x864xf32>
      %153 = arith.mulf %152, %78 : vector<8x864xf32>
      %cst_50 = arith.constant dense<0.000000e+00> : vector<8xf32>
      %154 = vector.multi_reduction <add>, %153, %cst_50 [1] : vector<8x864xf32> to vector<8xf32>
      %155 = vector.shape_cast %154 : vector<8xf32> to vector<8x1xf32>
      %cst_51 = arith.constant dense<0.000000e+00> : vector<8xf32>
      %156 = vector.multi_reduction <add>, %152, %cst_51 [1] : vector<8x864xf32> to vector<8xf32>
      %157 = vector.shape_cast %156 : vector<8xf32> to vector<8x1xf32>
      %158 = tpu.reciprocal %157 {approx = true} : vector<8x1xf32> -> vector<8x1xf32>
      %159 = arith.mulf %155, %158 : vector<8x1xf32>
      %160 = vector.shape_cast %159 : vector<8x1xf32> to vector<1x8x1xf32>
      %cst_52 = arith.constant dense<0.000000e+00> : vector<1xf32>
      %161 = vector.multi_reduction <add>, %160, %cst_52 [1, 2] : vector<1x8x1xf32> to vector<1xf32>
      %162 = vector.shape_cast %161 : vector<1xf32> to vector<1x1x1xf32>
      %163 = vector.extract %162[0, 0, 0] : f32 from vector<1x1x1xf32>
      %164 = arith.addf %123, %163 : f32
      %c2_i32_53 = arith.constant 2 : i32
      %165 = arith.index_cast %arg5 : i32 to index
      %166 = arith.index_cast %c2_i32_53 : i32 to index
      %c0_54 = arith.constant 0 : index
      %c0_55 = arith.constant 0 : index
      %167 = vector.load %arg1[%165, %166, %c0_54, %c0_55] : memref<2x3x8x2xf32, #tpu.memory_space<vmem>>, vector<1x1x8x2xf32>
      %168 = vector.shape_cast %167 : vector<1x1x8x2xf32> to vector<8x2xf32>
      %169 = vector.extract_strided_slice %168 {offsets = [0, 0], sizes = [8, 1], strides = [1, 1]} : vector<8x2xf32> to vector<8x1xf32>
      %cst_56 = arith.constant 3.600000e+01 : f32
      %170 = vector.broadcast %cst_56 : f32 to vector<8x1xf32>
      %171 = arith.mulf %169, %170 : vector<8x1xf32>
      %172 = vector.extract_strided_slice %168 {offsets = [0, 1], sizes = [8, 1], strides = [1, 1]} : vector<8x2xf32> to vector<8x1xf32>
      %cst_57 = arith.constant 2.400000e+01 : f32
      %173 = vector.broadcast %cst_57 : f32 to vector<8x1xf32>
      %174 = arith.mulf %172, %173 : vector<8x1xf32>
      %175 = arith.mulf %171, %171 : vector<8x1xf32>
      %176 = arith.mulf %174, %174 : vector<8x1xf32>
      %177 = arith.addf %175, %176 : vector<8x1xf32>
      %cst_58 = arith.constant 0.000000e+00 : f32
      %178 = vector.broadcast %cst_58 : f32 to vector<8x1xf32>
      %179 = arith.subf %178, %177 : vector<8x1xf32>
      %cst_59 = arith.constant 2.000000e+00 : f32
      %180 = vector.broadcast %cst_59 : f32 to vector<8x1xf32>
      %181 = arith.mulf %179, %180 : vector<8x1xf32>
      %182 = vector.broadcast %174 : vector<8x1xf32> to vector<8x864xf32>
      %183 = vector.broadcast %18 : vector<1x864xf32> to vector<8x864xf32>
      %184 = arith.mulf %182, %183 : vector<8x864xf32>
      %185 = vector.broadcast %16 : vector<1x864xf32> to vector<8x864xf32>
      %186 = arith.addf %185, %184 : vector<8x864xf32>
      %187 = vector.broadcast %171 : vector<8x1xf32> to vector<8x864xf32>
      %188 = vector.broadcast %20 : vector<1x864xf32> to vector<8x864xf32>
      %189 = arith.mulf %187, %188 : vector<8x864xf32>
      %190 = arith.addf %186, %189 : vector<8x864xf32>
      %191 = vector.broadcast %181 : vector<8x1xf32> to vector<8x864xf32>
      %192 = arith.addf %190, %191 : vector<8x864xf32>
      %193 = math.exp %192 : vector<8x864xf32>
      %194 = arith.mulf %193, %78 : vector<8x864xf32>
      %cst_60 = arith.constant dense<0.000000e+00> : vector<8xf32>
      %195 = vector.multi_reduction <add>, %194, %cst_60 [1] : vector<8x864xf32> to vector<8xf32>
      %196 = vector.shape_cast %195 : vector<8xf32> to vector<8x1xf32>
      %cst_61 = arith.constant dense<0.000000e+00> : vector<8xf32>
      %197 = vector.multi_reduction <add>, %193, %cst_61 [1] : vector<8x864xf32> to vector<8xf32>
      %198 = vector.shape_cast %197 : vector<8xf32> to vector<8x1xf32>
      %199 = tpu.reciprocal %198 {approx = true} : vector<8x1xf32> -> vector<8x1xf32>
      %200 = arith.mulf %196, %199 : vector<8x1xf32>
      %201 = vector.shape_cast %200 : vector<8x1xf32> to vector<1x8x1xf32>
      %cst_62 = arith.constant dense<0.000000e+00> : vector<1xf32>
      %202 = vector.multi_reduction <add>, %201, %cst_62 [1, 2] : vector<1x8x1xf32> to vector<1xf32>
      %203 = vector.shape_cast %202 : vector<1xf32> to vector<1x1x1xf32>
      %204 = vector.extract %203[0, 0, 0] : f32 from vector<1x1x1xf32>
      %205 = arith.addf %164, %204 : f32
      %c3_i32 = arith.constant 3 : i32
      %cst_63 = arith.constant 0.000000e+00 : f32
      %206 = arith.subf %cst_63, %205 : f32
      %cst_64 = arith.constant 3.000000e+00 : f32
      %207 = arith.mulf %cst_64, %82 : f32
      %208 = arith.subf %206, %207 : f32
      %cst_65 = arith.constant 4.8225309E-5 : f32
      %209 = arith.mulf %208, %cst_65 : f32
      %210 = arith.addf %arg6, %209 : f32
      scf.yield %210 : f32
    }
    %c2_i32_7 = arith.constant 2 : i32
    %23 = tpu.iota {dimensions = array<i32: 1>} : vector<1x216xi32>
    %24 = arith.sitofp %23 : vector<1x216xi32> to vector<1x216xf32>
    %cst_8 = arith.constant 5.000000e-01 : f32
    %25 = vector.broadcast %cst_8 : f32 to vector<1x216xf32>
    %26 = arith.addf %24, %25 : vector<1x216xf32>
    %cst_9 = arith.constant 1.800000e+01 : f32
    %27 = vector.broadcast %cst_9 : f32 to vector<1x216xf32>
    %28 = arith.divf %26, %27 : vector<1x216xf32>
    %29 = math.floor %28 : vector<1x216xf32>
    %cst_10 = arith.constant 1.800000e+01 : f32
    %30 = vector.broadcast %cst_10 : f32 to vector<1x216xf32>
    %31 = arith.mulf %29, %30 : vector<1x216xf32>
    %32 = arith.subf %24, %31 : vector<1x216xf32>
    %33 = arith.mulf %29, %29 : vector<1x216xf32>
    %34 = arith.mulf %32, %32 : vector<1x216xf32>
    %35 = arith.addf %33, %34 : vector<1x216xf32>
    %cst_11 = arith.constant 0.000000e+00 : f32
    %36 = vector.broadcast %cst_11 : f32 to vector<1x216xf32>
    %37 = arith.subf %36, %35 : vector<1x216xf32>
    %cst_12 = arith.constant 8.000000e+00 : f32
    %38 = vector.broadcast %cst_12 : f32 to vector<1x216xf32>
    %39 = arith.mulf %37, %38 : vector<1x216xf32>
    %cst_13 = arith.constant 1.600000e+01 : f32
    %40 = vector.broadcast %cst_13 : f32 to vector<1x216xf32>
    %41 = arith.mulf %29, %40 : vector<1x216xf32>
    %cst_14 = arith.constant 1.600000e+01 : f32
    %42 = vector.broadcast %cst_14 : f32 to vector<1x216xf32>
    %43 = arith.mulf %32, %42 : vector<1x216xf32>
    %c0_i32_15 = arith.constant 0 : i32
    %c2_i32_16 = arith.constant 2 : i32
    %44 = arith.addi %c0_i32_15, %c2_i32_16 : i32
    %c1_i32_17 = arith.constant 1 : i32
    %45 = scf.for %arg5 = %c0_i32_15 to %44 step %c1_i32_17 iter_args(%arg6 = %22) -> (f32)  : i32 {
      %53 = arith.index_cast %arg5 : i32 to index
      %c0_23 = arith.constant 0 : index
      %c0_24 = arith.constant 0 : index
      %54 = vector.load %arg3[%53, %c0_23, %c0_24] : memref<2x8x216xf32, #tpu.memory_space<vmem>>, vector<1x8x216xf32>
      %55 = vector.shape_cast %54 : vector<1x8x216xf32> to vector<8x216xf32>
      %cst_25 = arith.constant dense<0xFF800000> : vector<8xf32>
      %56 = vector.multi_reduction <maximumf>, %55, %cst_25 [1] : vector<8x216xf32> to vector<8xf32>
      %57 = vector.shape_cast %56 : vector<8xf32> to vector<8x1xf32>
      %58 = vector.broadcast %57 : vector<8x1xf32> to vector<8x216xf32>
      %59 = arith.subf %55, %58 : vector<8x216xf32>
      %60 = math.exp %59 : vector<8x216xf32>
      %cst_26 = arith.constant dense<0.000000e+00> : vector<8xf32>
      %61 = vector.multi_reduction <add>, %60, %cst_26 [1] : vector<8x216xf32> to vector<8xf32>
      %62 = vector.shape_cast %61 : vector<8xf32> to vector<8x1xf32>
      %63 = math.log %62 : vector<8x1xf32>
      %64 = vector.broadcast %63 : vector<8x1xf32> to vector<8x216xf32>
      %65 = arith.subf %59, %64 : vector<8x216xf32>
      %66 = tpu.reciprocal %62 {approx = true} : vector<8x1xf32> -> vector<8x1xf32>
      %67 = vector.broadcast %66 : vector<8x1xf32> to vector<8x216xf32>
      %68 = arith.mulf %60, %67 : vector<8x216xf32>
      %cst_27 = arith.constant 1.000000e+00 : f32
      %69 = vector.broadcast %cst_27 : f32 to vector<8x216xf32>
      %70 = arith.minimumf %68, %69 : vector<8x216xf32>
      %cst_28 = arith.constant -1.000000e+02 : f32
      %71 = vector.broadcast %cst_28 : f32 to vector<8x216xf32>
      %72 = arith.maximumf %65, %71 : vector<8x216xf32>
      %cst_29 = arith.constant 0.000000e+00 : f32
      %73 = vector.broadcast %cst_29 : f32 to vector<8x216xf32>
      %74 = arith.subf %73, %70 : vector<8x216xf32>
      %75 = math.log1p %74 : vector<8x216xf32>
      %cst_30 = arith.constant -1.000000e+02 : f32
      %76 = vector.broadcast %cst_30 : f32 to vector<8x216xf32>
      %77 = arith.maximumf %75, %76 : vector<8x216xf32>
      %78 = arith.subf %72, %77 : vector<8x216xf32>
      %79 = vector.shape_cast %77 : vector<8x216xf32> to vector<1x8x216xf32>
      %cst_31 = arith.constant dense<0.000000e+00> : vector<1xf32>
      %80 = vector.multi_reduction <add>, %79, %cst_31 [1, 2] : vector<1x8x216xf32> to vector<1xf32>
      %81 = vector.shape_cast %80 : vector<1xf32> to vector<1x1x1xf32>
      %82 = vector.extract %81[0, 0, 0] : f32 from vector<1x1x1xf32>
      %cst_32 = arith.constant 0.000000e+00 : f32
      %c0_i32_33 = arith.constant 0 : i32
      %83 = arith.index_cast %arg5 : i32 to index
      %84 = arith.index_cast %c0_i32_33 : i32 to index
      %c0_34 = arith.constant 0 : index
      %c0_35 = arith.constant 0 : index
      %85 = vector.load %arg1[%83, %84, %c0_34, %c0_35] : memref<2x3x8x2xf32, #tpu.memory_space<vmem>>, vector<1x1x8x2xf32>
      %86 = vector.shape_cast %85 : vector<1x1x8x2xf32> to vector<8x2xf32>
      %87 = vector.extract_strided_slice %86 {offsets = [0, 0], sizes = [8, 1], strides = [1, 1]} : vector<8x2xf32> to vector<8x1xf32>
      %cst_36 = arith.constant 1.800000e+01 : f32
      %88 = vector.broadcast %cst_36 : f32 to vector<8x1xf32>
      %89 = arith.mulf %87, %88 : vector<8x1xf32>
      %90 = vector.extract_strided_slice %86 {offsets = [0, 1], sizes = [8, 1], strides = [1, 1]} : vector<8x2xf32> to vector<8x1xf32>
      %cst_37 = arith.constant 1.200000e+01 : f32
      %91 = vector.broadcast %cst_37 : f32 to vector<8x1xf32>
      %92 = arith.mulf %90, %91 : vector<8x1xf32>
      %93 = arith.mulf %89, %89 : vector<8x1xf32>
      %94 = arith.mulf %92, %92 : vector<8x1xf32>
      %95 = arith.addf %93, %94 : vector<8x1xf32>
      %cst_38 = arith.constant 0.000000e+00 : f32
      %96 = vector.broadcast %cst_38 : f32 to vector<8x1xf32>
      %97 = arith.subf %96, %95 : vector<8x1xf32>
      %cst_39 = arith.constant 8.000000e+00 : f32
      %98 = vector.broadcast %cst_39 : f32 to vector<8x1xf32>
      %99 = arith.mulf %97, %98 : vector<8x1xf32>
      %100 = vector.broadcast %92 : vector<8x1xf32> to vector<8x216xf32>
      %101 = vector.broadcast %41 : vector<1x216xf32> to vector<8x216xf32>
      %102 = arith.mulf %100, %101 : vector<8x216xf32>
      %103 = vector.broadcast %39 : vector<1x216xf32> to vector<8x216xf32>
      %104 = arith.addf %103, %102 : vector<8x216xf32>
      %105 = vector.broadcast %89 : vector<8x1xf32> to vector<8x216xf32>
      %106 = vector.broadcast %43 : vector<1x216xf32> to vector<8x216xf32>
      %107 = arith.mulf %105, %106 : vector<8x216xf32>
      %108 = arith.addf %104, %107 : vector<8x216xf32>
      %109 = vector.broadcast %99 : vector<8x1xf32> to vector<8x216xf32>
      %110 = arith.addf %108, %109 : vector<8x216xf32>
      %111 = math.exp %110 : vector<8x216xf32>
      %112 = arith.mulf %111, %78 : vector<8x216xf32>
      %cst_40 = arith.constant dense<0.000000e+00> : vector<8xf32>
      %113 = vector.multi_reduction <add>, %112, %cst_40 [1] : vector<8x216xf32> to vector<8xf32>
      %114 = vector.shape_cast %113 : vector<8xf32> to vector<8x1xf32>
      %cst_41 = arith.constant dense<0.000000e+00> : vector<8xf32>
      %115 = vector.multi_reduction <add>, %111, %cst_41 [1] : vector<8x216xf32> to vector<8xf32>
      %116 = vector.shape_cast %115 : vector<8xf32> to vector<8x1xf32>
      %117 = tpu.reciprocal %116 {approx = true} : vector<8x1xf32> -> vector<8x1xf32>
      %118 = arith.mulf %114, %117 : vector<8x1xf32>
      %119 = vector.shape_cast %118 : vector<8x1xf32> to vector<1x8x1xf32>
      %cst_42 = arith.constant dense<0.000000e+00> : vector<1xf32>
      %120 = vector.multi_reduction <add>, %119, %cst_42 [1, 2] : vector<1x8x1xf32> to vector<1xf32>
      %121 = vector.shape_cast %120 : vector<1xf32> to vector<1x1x1xf32>
      %122 = vector.extract %121[0, 0, 0] : f32 from vector<1x1x1xf32>
      %123 = arith.addf %cst_32, %122 : f32
      %c1_i32_43 = arith.constant 1 : i32
      %124 = arith.index_cast %arg5 : i32 to index
      %125 = arith.index_cast %c1_i32_43 : i32 to index
      %c0_44 = arith.constant 0 : index
      %c0_45 = arith.constant 0 : index
      %126 = vector.load %arg1[%124, %125, %c0_44, %c0_45] : memref<2x3x8x2xf32, #tpu.memory_space<vmem>>, vector<1x1x8x2xf32>
      %127 = vector.shape_cast %126 : vector<1x1x8x2xf32> to vector<8x2xf32>
      %128 = vector.extract_strided_slice %127 {offsets = [0, 0], sizes = [8, 1], strides = [1, 1]} : vector<8x2xf32> to vector<8x1xf32>
      %cst_46 = arith.constant 1.800000e+01 : f32
      %129 = vector.broadcast %cst_46 : f32 to vector<8x1xf32>
      %130 = arith.mulf %128, %129 : vector<8x1xf32>
      %131 = vector.extract_strided_slice %127 {offsets = [0, 1], sizes = [8, 1], strides = [1, 1]} : vector<8x2xf32> to vector<8x1xf32>
      %cst_47 = arith.constant 1.200000e+01 : f32
      %132 = vector.broadcast %cst_47 : f32 to vector<8x1xf32>
      %133 = arith.mulf %131, %132 : vector<8x1xf32>
      %134 = arith.mulf %130, %130 : vector<8x1xf32>
      %135 = arith.mulf %133, %133 : vector<8x1xf32>
      %136 = arith.addf %134, %135 : vector<8x1xf32>
      %cst_48 = arith.constant 0.000000e+00 : f32
      %137 = vector.broadcast %cst_48 : f32 to vector<8x1xf32>
      %138 = arith.subf %137, %136 : vector<8x1xf32>
      %cst_49 = arith.constant 8.000000e+00 : f32
      %139 = vector.broadcast %cst_49 : f32 to vector<8x1xf32>
      %140 = arith.mulf %138, %139 : vector<8x1xf32>
      %141 = vector.broadcast %133 : vector<8x1xf32> to vector<8x216xf32>
      %142 = vector.broadcast %41 : vector<1x216xf32> to vector<8x216xf32>
      %143 = arith.mulf %141, %142 : vector<8x216xf32>
      %144 = vector.broadcast %39 : vector<1x216xf32> to vector<8x216xf32>
      %145 = arith.addf %144, %143 : vector<8x216xf32>
      %146 = vector.broadcast %130 : vector<8x1xf32> to vector<8x216xf32>
      %147 = vector.broadcast %43 : vector<1x216xf32> to vector<8x216xf32>
      %148 = arith.mulf %146, %147 : vector<8x216xf32>
      %149 = arith.addf %145, %148 : vector<8x216xf32>
      %150 = vector.broadcast %140 : vector<8x1xf32> to vector<8x216xf32>
      %151 = arith.addf %149, %150 : vector<8x216xf32>
      %152 = math.exp %151 : vector<8x216xf32>
      %153 = arith.mulf %152, %78 : vector<8x216xf32>
      %cst_50 = arith.constant dense<0.000000e+00> : vector<8xf32>
      %154 = vector.multi_reduction <add>, %153, %cst_50 [1] : vector<8x216xf32> to vector<8xf32>
      %155 = vector.shape_cast %154 : vector<8xf32> to vector<8x1xf32>
      %cst_51 = arith.constant dense<0.000000e+00> : vector<8xf32>
      %156 = vector.multi_reduction <add>, %152, %cst_51 [1] : vector<8x216xf32> to vector<8xf32>
      %157 = vector.shape_cast %156 : vector<8xf32> to vector<8x1xf32>
      %158 = tpu.reciprocal %157 {approx = true} : vector<8x1xf32> -> vector<8x1xf32>
      %159 = arith.mulf %155, %158 : vector<8x1xf32>
      %160 = vector.shape_cast %159 : vector<8x1xf32> to vector<1x8x1xf32>
      %cst_52 = arith.constant dense<0.000000e+00> : vector<1xf32>
      %161 = vector.multi_reduction <add>, %160, %cst_52 [1, 2] : vector<1x8x1xf32> to vector<1xf32>
      %162 = vector.shape_cast %161 : vector<1xf32> to vector<1x1x1xf32>
      %163 = vector.extract %162[0, 0, 0] : f32 from vector<1x1x1xf32>
      %164 = arith.addf %123, %163 : f32
      %c2_i32_53 = arith.constant 2 : i32
      %165 = arith.index_cast %arg5 : i32 to index
      %166 = arith.index_cast %c2_i32_53 : i32 to index
      %c0_54 = arith.constant 0 : index
      %c0_55 = arith.constant 0 : index
      %167 = vector.load %arg1[%165, %166, %c0_54, %c0_55] : memref<2x3x8x2xf32, #tpu.memory_space<vmem>>, vector<1x1x8x2xf32>
      %168 = vector.shape_cast %167 : vector<1x1x8x2xf32> to vector<8x2xf32>
      %169 = vector.extract_strided_slice %168 {offsets = [0, 0], sizes = [8, 1], strides = [1, 1]} : vector<8x2xf32> to vector<8x1xf32>
      %cst_56 = arith.constant 1.800000e+01 : f32
      %170 = vector.broadcast %cst_56 : f32 to vector<8x1xf32>
      %171 = arith.mulf %169, %170 : vector<8x1xf32>
      %172 = vector.extract_strided_slice %168 {offsets = [0, 1], sizes = [8, 1], strides = [1, 1]} : vector<8x2xf32> to vector<8x1xf32>
      %cst_57 = arith.constant 1.200000e+01 : f32
      %173 = vector.broadcast %cst_57 : f32 to vector<8x1xf32>
      %174 = arith.mulf %172, %173 : vector<8x1xf32>
      %175 = arith.mulf %171, %171 : vector<8x1xf32>
      %176 = arith.mulf %174, %174 : vector<8x1xf32>
      %177 = arith.addf %175, %176 : vector<8x1xf32>
      %cst_58 = arith.constant 0.000000e+00 : f32
      %178 = vector.broadcast %cst_58 : f32 to vector<8x1xf32>
      %179 = arith.subf %178, %177 : vector<8x1xf32>
      %cst_59 = arith.constant 8.000000e+00 : f32
      %180 = vector.broadcast %cst_59 : f32 to vector<8x1xf32>
      %181 = arith.mulf %179, %180 : vector<8x1xf32>
      %182 = vector.broadcast %174 : vector<8x1xf32> to vector<8x216xf32>
      %183 = vector.broadcast %41 : vector<1x216xf32> to vector<8x216xf32>
      %184 = arith.mulf %182, %183 : vector<8x216xf32>
      %185 = vector.broadcast %39 : vector<1x216xf32> to vector<8x216xf32>
      %186 = arith.addf %185, %184 : vector<8x216xf32>
      %187 = vector.broadcast %171 : vector<8x1xf32> to vector<8x216xf32>
      %188 = vector.broadcast %43 : vector<1x216xf32> to vector<8x216xf32>
      %189 = arith.mulf %187, %188 : vector<8x216xf32>
      %190 = arith.addf %186, %189 : vector<8x216xf32>
      %191 = vector.broadcast %181 : vector<8x1xf32> to vector<8x216xf32>
      %192 = arith.addf %190, %191 : vector<8x216xf32>
      %193 = math.exp %192 : vector<8x216xf32>
      %194 = arith.mulf %193, %78 : vector<8x216xf32>
      %cst_60 = arith.constant dense<0.000000e+00> : vector<8xf32>
      %195 = vector.multi_reduction <add>, %194, %cst_60 [1] : vector<8x216xf32> to vector<8xf32>
      %196 = vector.shape_cast %195 : vector<8xf32> to vector<8x1xf32>
      %cst_61 = arith.constant dense<0.000000e+00> : vector<8xf32>
      %197 = vector.multi_reduction <add>, %193, %cst_61 [1] : vector<8x216xf32> to vector<8xf32>
      %198 = vector.shape_cast %197 : vector<8xf32> to vector<8x1xf32>
      %199 = tpu.reciprocal %198 {approx = true} : vector<8x1xf32> -> vector<8x1xf32>
      %200 = arith.mulf %196, %199 : vector<8x1xf32>
      %201 = vector.shape_cast %200 : vector<8x1xf32> to vector<1x8x1xf32>
      %cst_62 = arith.constant dense<0.000000e+00> : vector<1xf32>
      %202 = vector.multi_reduction <add>, %201, %cst_62 [1, 2] : vector<1x8x1xf32> to vector<1xf32>
      %203 = vector.shape_cast %202 : vector<1xf32> to vector<1x1x1xf32>
      %204 = vector.extract %203[0, 0, 0] : f32 from vector<1x1x1xf32>
      %205 = arith.addf %164, %204 : f32
      %c3_i32 = arith.constant 3 : i32
      %cst_63 = arith.constant 0.000000e+00 : f32
      %206 = arith.subf %cst_63, %205 : f32
      %cst_64 = arith.constant 3.000000e+00 : f32
      %207 = arith.mulf %cst_64, %82 : f32
      %208 = arith.subf %206, %207 : f32
      %cst_65 = arith.constant 1.92901236E-4 : f32
      %209 = arith.mulf %208, %cst_65 : f32
      %210 = arith.addf %arg6, %209 : f32
      scf.yield %210 : f32
    }
    %c2_i32_18 = arith.constant 2 : i32
    %46 = tpu.iota {dimensions = array<i32: 2>} : vector<1x1x128xi32>
    %c0_i32_19 = arith.constant 0 : i32
    %47 = vector.broadcast %c0_i32_19 : i32 to vector<1x1x128xi32>
    %48 = arith.cmpi eq, %46, %47 : vector<1x1x128xi32>
    %cst_20 = arith.constant 0.000000e+00 : f32
    %49 = vector.broadcast %45 : f32 to vector<1x1x128xf32>
    %50 = vector.broadcast %cst_20 : f32 to vector<1x1x128xf32>
    %51 = arith.select %48, %49, %50 : vector<1x1x128xi1>, vector<1x1x128xf32>
    %c0 = arith.constant 0 : index
    %c0_21 = arith.constant 0 : index
    %c0_22 = arith.constant 0 : index
    %52 = vector.load %arg4[%c0, %c0_21, %c0_22] : memref<1x1x128xf32, #tpu.memory_space<vmem>>, vector<1x1x128xf32>
    tpu.vector_store %arg4[%c0, %c0_21, %c0_22], %51 {strides = array<i32>} : memref<1x1x128xf32, #tpu.memory_space<vmem>>, vector<1x1x128xf32>,
    return
  }
  func.func @transform_0(%arg0: i32) -> (i32, i32, i32, i32) {
    %c0_i32 = arith.constant 0 : i32
    %c0_i32_0 = arith.constant 0 : i32
    %c0_i32_1 = arith.constant 0 : i32
    %c0_i32_2 = arith.constant 0 : i32
    return %arg0, %c0_i32, %c0_i32_0, %c0_i32_1 : i32, i32, i32, i32
  }
  func.func @transform_1(%arg0: i32) -> (i32, i32, i32) {
    %c0_i32 = arith.constant 0 : i32
    %c0_i32_0 = arith.constant 0 : i32
    %c0_i32_1 = arith.constant 0 : i32
    return %arg0, %c0_i32, %c0_i32_0 : i32, i32, i32
  }
  func.func @transform_2(%arg0: i32) -> (i32, i32, i32) {
    %c0_i32 = arith.constant 0 : i32
    %c0_i32_0 = arith.constant 0 : i32
    %c0_i32_1 = arith.constant 0 : i32
    return %arg0, %c0_i32, %c0_i32_0 : i32, i32, i32
  }
  func.func @transform_3(%arg0: i32) -> (i32, i32, i32) {
    %c0_i32 = arith.constant 0 : i32
    %c0_i32_0 = arith.constant 0 : i32
    %c0_i32_1 = arith.constant 0 : i32
    return %arg0, %c0_i32, %c0_i32_0 : i32, i32, i32
  }
}

</mosaic_0001>

<llo_original>
// kernel: _pi_loss_impl.1
$region0: #{_pi_loss_impl.1}
  #allocation0 [shape = 'u32[]', space=smem, size = 0x4, offset = 0x4, fixed_abs, tag = 'smem constant byte address 0x4 - core index']
  #allocation1 [shape = 'u32[144,128]{1,0:T(1,128)}', space=vmem, size = 0x12000, scoped, tag = 'internal scratch']
  %s0 = inlined_call_operand.vmem [shape: f32[4,3,8,2], index: 0, kind: input, shape index: {}]
  %s1 = inlined_call_operand.vmem [shape: f32[4,8,864], index: 1, kind: input, shape index: {}]
  %s2 = inlined_call_operand.vmem [shape: f32[4,8,216], index: 2, kind: input, shape index: {}]
  %s3 = inlined_call_operand.vmem [shape: f32[2,1,128], index: 3, kind: output, shape index: {}]
  %s4 = sld [smem:[#allocation0]]
  $region59: #{_pi_loss_impl.1} parent=0
    _
  %s6 = ssub.s32 1, %s4
  %s7 = scalar_select 0, %s6, %s4
  loop: start=0, step=1, limit=4
  $region2: #{_pi_loss_impl.1} parent=0 // loop_pre_header
    _
  $region3: #{_pi_loss_impl.1} parent=0 // loop_header
    %s9 = sphi 0, %s13
    %p10 = scmp.ge.s32.totalorder %s9, 4
    %s19 = sphi 0, %s21
    %s22 = sphi 0, %s19
    %s23 = sphi 0, %s22
    %s39 = sphi 0, %s23
    %s45 = sphi 0, %s47
    %s48 = sphi 0, %s45
    %s49 = sphi 0, %s48
    %s65 = sphi 0, %s49
    %s71 = sphi 0, %s73
    %s74 = sphi 0, %s71
    %s75 = sphi 0, %s74
    %s91 = sphi 0, %s75
    %s97 = sphi 0, %s99
    %s100 = sphi 0, %s97
    %s101 = sphi 0, %s100
    %s117 = sphi 0, %s101
  $region4: #{_pi_loss_impl.1} parent=0 // loop_header_branch
    %12 = sbr.rel (%p10) target = $region8
  $region5: #{_pi_loss_impl.1} parent=0 // loop_body
    %s14 = ssub.s32 %s9, 1
    %s15 = ssub.s32 %s9, 2
    %s16 = sadd.s32 %s9, 1
    %s17 = ssub.s32 %s9, %s16
    %p18 = scmp.eq.s32.totalorder %s17, 0
    %s20 = sadd.s32 %s19, 1
    %s21 = scalar_select %p18, %s19, %s20
    %p24 = pneg %p18
    %p25 = scmp.eq.s32.totalorder %s9, 1
    %p26 = por %p24, %p25
    %p27 = scmp.ne.s32.totalorder %s19, %s22
    %p28 = scmp.eq.s32.totalorder %s9, 0
    %p29 = por %p27, %p28
    %p30 = scmp.ne.s32.totalorder %s19, %s22
    %p31 = scmp.eq.s32.totalorder %s14, 1
    %p32 = por %p30, %p31
    %p33 = scmp.ne.s32.totalorder %s22, %s23
    %p34 = scmp.eq.s32.totalorder %s14, 0
    %p35 = por %p33, %p34
    %p36 = scmp.ne.s32.totalorder %s22, %s23
    %p37 = scmp.eq.s32.totalorder %s15, 1
    %p38 = por %p36, %p37
    %p40 = scmp.ne.s32.totalorder %s23, %s39
    %p41 = scmp.eq.s32.totalorder %s15, 0
    %p42 = por %p40, %p41
    %s43 = ssub.s32 %s9, %s16
    %p44 = scmp.eq.s32.totalorder %s43, 0
    %s46 = sadd.s32 %s45, 1
    %s47 = scalar_select %p44, %s45, %s46
    %p50 = pneg %p44
    %p51 = scmp.eq.s32.totalorder %s9, 1
    %p52 = por %p50, %p51
    %p53 = scmp.ne.s32.totalorder %s45, %s48
    %p54 = scmp.eq.s32.totalorder %s9, 0
    %p55 = por %p53, %p54
    %p56 = scmp.ne.s32.totalorder %s45, %s48
    %p57 = scmp.eq.s32.totalorder %s14, 1
    %p58 = por %p56, %p57
    %p59 = scmp.ne.s32.totalorder %s48, %s49
    %p60 = scmp.eq.s32.totalorder %s14, 0
    %p61 = por %p59, %p60
    %p62 = scmp.ne.s32.totalorder %s48, %s49
    %p63 = scmp.eq.s32.totalorder %s15, 1
    %p64 = por %p62, %p63
    %p66 = scmp.ne.s32.totalorder %s49, %s65
    %p67 = scmp.eq.s32.totalorder %s15, 0
    %p68 = por %p66, %p67
    %s69 = ssub.s32 %s9, %s16
    %p70 = scmp.eq.s32.totalorder %s69, 0
    %s72 = sadd.s32 %s71, 1
    %s73 = scalar_select %p70, %s71, %s72
    %p76 = pneg %p70
    %p77 = scmp.eq.s32.totalorder %s9, 1
    %p78 = por %p76, %p77
    %p79 = scmp.ne.s32.totalorder %s71, %s74
    %p80 = scmp.eq.s32.totalorder %s9, 0
    %p81 = por %p79, %p80
    %p82 = scmp.ne.s32.totalorder %s71, %s74
    %p83 = scmp.eq.s32.totalorder %s14, 1
    %p84 = por %p82, %p83
    %p85 = scmp.ne.s32.totalorder %s74, %s75
    %p86 = scmp.eq.s32.totalorder %s14, 0
    %p87 = por %p85, %p86
    %p88 = scmp.ne.s32.totalorder %s74, %s75
    %p89 = scmp.eq.s32.totalorder %s15, 1
    %p90 = por %p88, %p89
    %p92 = scmp.ne.s32.totalorder %s75, %s91
    %p93 = scmp.eq.s32.totalorder %s15, 0
    %p94 = por %p92, %p93
    %s95 = ssub.s32 %s9, %s16
    %p96 = scmp.eq.s32.totalorder %s95, 0
    %s98 = sadd.s32 %s97, 1
    %s99 = scalar_select %p96, %s97, %s98
    %p102 = pneg %p96
    %p103 = scmp.eq.s32.totalorder %s9, 1
    %p104 = por %p102, %p103
    %p105 = scmp.ne.s32.totalorder %s97, %s100
    %p106 = scmp.eq.s32.totalorder %s9, 0
    %p107 = por %p105, %p106
    %p108 = scmp.ne.s32.totalorder %s97, %s100
    %p109 = scmp.eq.s32.totalorder %s14, 1
    %p110 = por %p108, %p109
    %p111 = scmp.ne.s32.totalorder %s100, %s101
    %p112 = scmp.eq.s32.totalorder %s14, 0
    %p113 = por %p111, %p112
    %p114 = scmp.ne.s32.totalorder %s100, %s101
    %p115 = scmp.eq.s32.totalorder %s15, 1
    %p116 = por %p114, %p115
    %p118 = scmp.ne.s32.totalorder %s101, %s117
    %p119 = scmp.eq.s32.totalorder %s15, 0
    %p120 = por %p118, %p119
    %p121 = scmp.le.s32.totalorder 1, %s9
    %p122 = scmp.lt.s32.totalorder %s9, 3
    %p123 = pnand %p121, %p122
    %p124 = pneg %p123
    // Predicated region
    $region9: #{_pi_loss_impl.1} parent=5 // pred_check
      _
    $region10: #{_pi_loss_impl.1} parent=5 // pred_check_branch
      %126 = sbr.rel (%p123) target = $region12
    $region11: #{_pi_loss_impl.1} parent=5 // pred_region
      %s127 = ssub.s32 %s9, 1
    $region12: #{_pi_loss_impl.1} parent=5 // pred_fallthru
      _
    %p128 = scmp.lt.s32.totalorder %s9, 2
    // Predicated region
    $region13: #{_pi_loss_impl.1} parent=5 // pred_check
      %p129 = pneg %p128
    $region14: #{_pi_loss_impl.1} parent=5 // pred_check_branch
      %131 = sbr.rel (%p129) target = $region16
    $region15: #{_pi_loss_impl.1} parent=5 // pred_region
      // Predicated region
      $region17: #{_pi_loss_impl.1} parent=15 // pred_check
        %p132 = pneg %p29
      $region18: #{_pi_loss_impl.1} parent=15 // pred_check_branch
        %134 = sbr.rel (%p132) target = $region20
      $region19: #{_pi_loss_impl.1} parent=15 // pred_region
        %s135 = smul.u32 2, %s9
        %p136 = scmp.lt.s32.totalorder %s135, 3
        %s137 = scalar_select %p136, %s135, 3
        %s138 = smul.addr %s137, 3
        %s139 = smul.addr %s138, 8
        %s140 = scalar_lea.vmem %s0, %s139
        %s141 = smul.u32 2, %s9
      $region20: #{_pi_loss_impl.1} parent=15 // pred_fallthru
        _
      // Predicated region
      $region21: #{_pi_loss_impl.1} parent=15 // pred_check
        %p142 = pneg %p55
      $region22: #{_pi_loss_impl.1} parent=15 // pred_check_branch
        %144 = sbr.rel (%p142) target = $region24
      $region23: #{_pi_loss_impl.1} parent=15 // pred_region
        %s145 = smul.u32 2, %s9
        %p146 = scmp.lt.s32.totalorder %s145, 3
        %s147 = scalar_select %p146, %s145, 3
        %s148 = smul.addr %s147, 7
        %s149 = smul.addr %s148, 8
        %s150 = scalar_lea.vmem %s1, %s149
        %s151 = smul.u32 2, %s9
      $region24: #{_pi_loss_impl.1} parent=15 // pred_fallthru
        _
      // Predicated region
      $region25: #{_pi_loss_impl.1} parent=15 // pred_check
        %p152 = pneg %p81
      $region26: #{_pi_loss_impl.1} parent=15 // pred_check_branch
        %154 = sbr.rel (%p152) target = $region28
      $region27: #{_pi_loss_impl.1} parent=15 // pred_region
        %s155 = smul.u32 2, %s9
        %p156 = scmp.lt.s32.totalorder %s155, 3
        %s157 = scalar_select %p156, %s155, 3
        %s158 = smul.addr %s157, 2
        %s159 = smul.addr %s158, 8
        %s160 = scalar_lea.vmem %s2, %s159
        %s161 = smul.u32 2, %s9
      $region28: #{_pi_loss_impl.1} parent=15 // pred_fallthru
        _
    $region16: #{_pi_loss_impl.1} parent=5 // pred_fallthru
      _
    %p162 = scmp.le.s32.totalorder 1, %s9
    %p163 = scmp.lt.s32.totalorder %s9, 3
    %p164 = pnand %p162, %p163
    %p165 = pneg %p164
    // Predicated region
    $region29: #{_pi_loss_impl.1} parent=5 // pred_check
      _
    $region30: #{_pi_loss_impl.1} parent=5 // pred_check_branch
      %167 = sbr.rel (%p164) target = $region32
    $region31: #{_pi_loss_impl.1} parent=5 // pred_region
      %s168 = ssub.s32 %s9, 1
      %s169 = smul.u32 2, %s14
      %p170 = scmp.lt.s32.totalorder %s169, 3
      %s171 = scalar_select %p170, %s169, 3
      %s172 = smul.addr %s171, 3
      %s173 = smul.addr %s172, 8
      %s174 = scalar_lea.vmem %s0, %s173
      %p175 = pneg %p35
      %p176 = pneg %p32
      %s177 = smul.u32 2, %s14
      %p178 = scmp.lt.s32.totalorder %s177, 3
      %s179 = scalar_select %p178, %s177, 3
      %s180 = smul.addr %s179, 7
      %s181 = smul.addr %s180, 8
      %s182 = scalar_lea.vmem %s1, %s181
      %p183 = pneg %p61
      %p184 = pneg %p58
      %s185 = smul.u32 2, %s14
      %p186 = scmp.lt.s32.totalorder %s185, 3
      %s187 = scalar_select %p186, %s185, 3
      %s188 = smul.addr %s187, 2
      %s189 = smul.addr %s188, 8
      %s190 = scalar_lea.vmem %s2, %s189
      %p191 = pneg %p87
      %p192 = pneg %p84
      %p193 = pneg %p113
      %p194 = pneg %p110
      %p195 = scmp.lt.s32.totalorder %s14, 1
      %s196 = scalar_select %p195, %s14, 1
      %s197 = scalar_lea.vmem %s3, %s196
      %s198 = smul.u32 2, %s14
      %p199 = scmp.lt.s32.totalorder %s198, 3
      %s200 = scalar_select %p199, %s198, 3
      %s201 = smul.addr %s200, 3
      %s202 = smul.addr %s201, 8
      %s203 = scalar_lea.vmem %s0, %s202
      %s204 = smul.u32 2, %s14
      %s205 = smul.u32 2, %s14
      %p206 = scmp.lt.s32.totalorder %s205, 3
      %s207 = scalar_select %p206, %s205, 3
      %s208 = smul.addr %s207, 7
      %s209 = smul.addr %s208, 8
      %s210 = scalar_lea.vmem %s1, %s209
      %s211 = smul.u32 2, %s14
      %s212 = smul.u32 2, %s14
      %p213 = scmp.lt.s32.totalorder %s212, 3
      %s214 = scalar_select %p213, %s212, 3
      %s215 = smul.addr %s214, 2
      %s216 = smul.addr %s215, 8
      %s217 = scalar_lea.vmem %s2, %s216
      %s218 = smul.u32 2, %s14
      %p219 = scmp.lt.s32.totalorder %s14, 1
      %s220 = scalar_select %p219, %s14, 1
      %s221 = scalar_lea.vmem %s3, %s220
      %v222 = vlaneseq
      %v223 = vand.u32 %v222, 127
      %v224 = vadd.s32 %v223, 128
      %v225 = vadd.s32 %v223, 256
      %v226 = vadd.s32 %v223, 384
      %v227 = vadd.s32 %v223, 512
      %v228 = vadd.s32 %v223, 640
      %v229 = vadd.s32 %v223, 768
      %v230 = vcvt.s32.f32 %v223
      %v231 = vcvt.s32.f32 %v224
      %v232 = vcvt.s32.f32 %v225
      %v233 = vcvt.s32.f32 %v226
      %v234 = vcvt.s32.f32 %v227
      %v235 = vcvt.s32.f32 %v228
      %v236 = vcvt.s32.f32 %v229
      %v237 = vadd.f32 %v230, 0.5
      %v238 = vadd.f32 %v231, 0.5
      %v239 = vadd.f32 %v232, 0.5
      %v240 = vadd.f32 %v233, 0.5
      %v241 = vadd.f32 %v234, 0.5
      %v242 = vadd.f32 %v235, 0.5
      %v243 = vadd.f32 %v236, 0.5
      %v244 = vrcp.pop 36.0
      %v245 = vmul.f32 %v237, %v244
      %v246 = vmul.f32 %v238, %v244
      %v247 = vmul.f32 %v239, %v244
      %v248 = vmul.f32 %v240, %v244
      %v249 = vmul.f32 %v241, %v244
      %v250 = vmul.f32 %v242, %v244
      %v251 = vmul.f32 %v243, %v244
      %v252 = vfloor.f32 %v245
      %v253 = vfloor.f32 %v246
      %v254 = vfloor.f32 %v247
      %v255 = vfloor.f32 %v248
      %v256 = vfloor.f32 %v249
      %v257 = vfloor.f32 %v250
      %v258 = vfloor.f32 %v251
      %v259 = vmul.f32 %v252, 36.0
      %v260 = vmul.f32 %v253, 36.0
      %v261 = vmul.f32 %v254, 36.0
      %v262 = vmul.f32 %v255, 36.0
      %v263 = vmul.f32 %v256, 36.0
      %v264 = vmul.f32 %v257, 36.0
      %v265 = vmul.f32 %v258, 36.0
      %v266 = vsub.f32 %v230, %v259
      %v267 = vsub.f32 %v231, %v260
      %v268 = vsub.f32 %v232, %v261
      %v269 = vsub.f32 %v233, %v262
      %v270 = vsub.f32 %v234, %v263
      %v271 = vsub.f32 %v235, %v264
      %v272 = vsub.f32 %v236, %v265
      %v273 = vmul.f32 %v252, %v252
      %v274 = vmul.f32 %v253, %v253
      %v275 = vmul.f32 %v254, %v254
      %v276 = vmul.f32 %v255, %v255
      %v277 = vmul.f32 %v256, %v256
      %v278 = vmul.f32 %v257, %v257
      %v279 = vmul.f32 %v258, %v258
      %v280 = vmul.f32 %v266, %v266
      %v281 = vmul.f32 %v267, %v267
      %v282 = vmul.f32 %v268, %v268
      %v283 = vmul.f32 %v269, %v269
      %v284 = vmul.f32 %v270, %v270
      %v285 = vmul.f32 %v271, %v271
      %v286 = vmul.f32 %v272, %v272
      %v287 = vadd.f32 %v273, %v280
      %v288 = vadd.f32 %v274, %v281
      %v289 = vadd.f32 %v275, %v282
      %v290 = vadd.f32 %v276, %v283
      %v291 = vadd.f32 %v277, %v284
      %v292 = vadd.f32 %v278, %v285
      %v293 = vadd.f32 %v279, %v286
      %v294 = vsub.f32 0.0, %v287
      %v295 = vsub.f32 0.0, %v288
      %v296 = vsub.f32 0.0, %v289
      %v297 = vsub.f32 0.0, %v290
      %v298 = vsub.f32 0.0, %v291
      %v299 = vsub.f32 0.0, %v292
      %v300 = vsub.f32 0.0, %v293
      %v301 = vmul.f32 %v294, 2.0
      %v302 = vmul.f32 %v295, 2.0
      %v303 = vmul.f32 %v296, 2.0
      %v304 = vmul.f32 %v297, 2.0
      %v305 = vmul.f32 %v298, 2.0
      %v306 = vmul.f32 %v299, 2.0
      %v307 = vmul.f32 %v300, 2.0
      %v308 = vmul.f32 %v252, 4.0
      %v309 = vmul.f32 %v253, 4.0
      %v310 = vmul.f32 %v254, 4.0
      %v311 = vmul.f32 %v255, 4.0
      %v312 = vmul.f32 %v256, 4.0
      %v313 = vmul.f32 %v257, 4.0
      %v314 = vmul.f32 %v258, 4.0
      %v315 = vmul.f32 %v266, 4.0
      %v316 = vmul.f32 %v267, 4.0
      %v317 = vmul.f32 %v268, 4.0
      %v318 = vmul.f32 %v269, 4.0
      %v319 = vmul.f32 %v270, 4.0
      %v320 = vmul.f32 %v271, 4.0
      %v321 = vmul.f32 %v272, 4.0
      loop: start=0, step=1, limit=2
      $region33: #{_pi_loss_impl.1} parent=31 // loop_pre_header
        _
      $region34: #{_pi_loss_impl.1} parent=31 // loop_header
        %s323 = sphi 0, %s327
        %p324 = scmp.ge.s32.totalorder %s323, 2
        %s328 = sphi 0.0, %s863
      $region35: #{_pi_loss_impl.1} parent=31 // loop_header_branch
        %326 = sbr.rel (%p324) target = $region39
      $region36: #{_pi_loss_impl.1} parent=31 // loop_body
        %s329 = smul.u32 %s323, 7
        %s330 = smul.addr %s329, 8
        %s331 = scalar_lea.vmem %s210, %s330
        %v332 = vld [vmem:[%s331] sm:$0xff]
        %v333 = vld [vmem:[%s331 + $0x8] sm:$0xff]
        %v334 = vld [vmem:[%s331 + $0x10] sm:$0xff]
        %v335 = vld [vmem:[%s331 + $0x18] sm:$0xff]
        %v336 = vld [vmem:[%s331 + $0x20] sm:$0xff]
        %v337 = vld [vmem:[%s331 + $0x28] sm:$0xff]
        %v338 = vld [vmem:[%s331 + $0x30] sm:$0xff]
        %v339 = vmax.f32 %v332, %v336
        %v340 = vmax.f32 %v333, %v337
        %vm341 = vcmask 785408
        %v342 = vsel %vm341, %v338, -inf
        %v343 = vmax.f32 %v334, %v342
        %v344 = vmax.f32 %v339, %v340
        %v345 = vmax.f32 %v343, %v335
        %v346 = vmax.f32 %v344, %v345
        %347 = vmax.xlane.f32.xlu0 %v346
        %v348 = vpop.xlane.xlu0 %347
        %v349 = vsub.f32 %v332, %v348
        %v350 = vsub.f32 %v333, %v348
        %v351 = vsub.f32 %v334, %v348
        %v352 = vsub.f32 %v335, %v348
        %v353 = vsub.f32 %v336, %v348
        %v354 = vsub.f32 %v337, %v348
        %v355 = vsub.f32 %v338, %v348
        %v356 = vmul.f32 %v349, 1.442695
        %v357 = vpow.pop %v356
        %v358 = vmul.f32 %v350, 1.442695
        %v359 = vpow.pop %v358
        %v360 = vmul.f32 %v351, 1.442695
        %v361 = vpow.pop %v360
        %v362 = vmul.f32 %v352, 1.442695
        %v363 = vpow.pop %v362
        %v364 = vmul.f32 %v353, 1.442695
        %v365 = vpow.pop %v364
        %v366 = vmul.f32 %v354, 1.442695
        %v367 = vpow.pop %v366
        %v368 = vmul.f32 %v355, 1.442695
        %v369 = vpow.pop %v368
        %v370 = vadd.f32 %v357, %v359
        %v371 = vadd.f32 %v370, %v361
        %v372 = vadd.f32 %v371, %v363
        %v373 = vadd.f32 %v372, %v365
        %v374 = vadd.f32 %v373, %v367
        %v375 = vsel %vm341, %v369, 0.0
        %v376 = vadd.f32 %v374, %v375
        %377 = vadd.xlane.f32.xlu0 %v376
        %v378 = vpop.xlane.xlu0 %377
        %v379 = vlog2.pop %v378
        %v380 = vmul.f32 %v379, 0.6931472
        %v381 = vsub.f32 %v349, %v380
        %v382 = vsub.f32 %v350, %v380
        %v383 = vsub.f32 %v351, %v380
        %v384 = vsub.f32 %v352, %v380
        %v385 = vsub.f32 %v353, %v380
        %v386 = vsub.f32 %v354, %v380
        %v387 = vsub.f32 %v355, %v380
        %v388 = vrcp.pop %v378
        %v389 = vmul.f32 %v357, %v388
        %v390 = vmul.f32 %v359, %v388
        %v391 = vmul.f32 %v361, %v388
        %v392 = vmul.f32 %v363, %v388
        %v393 = vmul.f32 %v365, %v388
        %v394 = vmul.f32 %v367, %v388
        %v395 = vmul.f32 %v369, %v388
        %v396 = vmin.f32 %v389, 1.0
        %v397 = vmin.f32 %v390, 1.0
        %v398 = vmin.f32 %v391, 1.0
        %v399 = vmin.f32 %v392, 1.0
        %v400 = vmin.f32 %v393, 1.0
        %v401 = vmin.f32 %v394, 1.0
        %v402 = vmin.f32 %v395, 1.0
        %v403 = vmax.f32 %v381, -100.0
        %v404 = vmax.f32 %v382, -100.0
        %v405 = vmax.f32 %v383, -100.0
        %v406 = vmax.f32 %v384, -100.0
        %v407 = vmax.f32 %v385, -100.0
        %v408 = vmax.f32 %v386, -100.0
        %v409 = vmax.f32 %v387, -100.0
        %v410 = vsub.f32 0.0, %v396
        %v411 = vsub.f32 0.0, %v397
        %v412 = vsub.f32 0.0, %v398
        %v413 = vsub.f32 0.0, %v399
        %v414 = vsub.f32 0.0, %v400
        %v415 = vsub.f32 0.0, %v401
        %v416 = vsub.f32 0.0, %v402
        %v417 = vadd.f32 %v410, 1.0
        %v418 = vlog2.pop %v417
        %v419 = vmul.f32 %v418, 0.6931472
        %v420 = vmul.f32 -0.5, %v410
        %v421 = vadd.f32 %v420, 1.0
        %v422 = vmul.f32 %v421, %v410
        %v423 = vand.u32 2147483647, %v410
        %vm424 = vcmp.lt.f32.partialorder %v423, 0.0004427343
        %v425 = vsel %vm424, %v422, %v419
        %v426 = vadd.f32 %v411, 1.0
        %v427 = vlog2.pop %v426
        %v428 = vmul.f32 %v427, 0.6931472
        %v429 = vmul.f32 -0.5, %v411
        %v430 = vadd.f32 %v429, 1.0
        %v431 = vmul.f32 %v430, %v411
        %v432 = vand.u32 2147483647, %v411
        %vm433 = vcmp.lt.f32.partialorder %v432, 0.0004427343
        %v434 = vsel %vm433, %v431, %v428
        %v435 = vadd.f32 %v412, 1.0
        %v436 = vlog2.pop %v435
        %v437 = vmul.f32 %v436, 0.6931472
        %v438 = vmul.f32 -0.5, %v412
        %v439 = vadd.f32 %v438, 1.0
        %v440 = vmul.f32 %v439, %v412
        %v441 = vand.u32 2147483647, %v412
        %vm442 = vcmp.lt.f32.partialorder %v441, 0.0004427343
        %v443 = vsel %vm442, %v440, %v437
        %v444 = vadd.f32 %v413, 1.0
        %v445 = vlog2.pop %v444
        %v446 = vmul.f32 %v445, 0.6931472
        %v447 = vmul.f32 -0.5, %v413
        %v448 = vadd.f32 %v447, 1.0
        %v449 = vmul.f32 %v448, %v413
        %v450 = vand.u32 2147483647, %v413
        %vm451 = vcmp.lt.f32.partialorder %v450, 0.0004427343
        %v452 = vsel %vm451, %v449, %v446
        %v453 = vadd.f32 %v414, 1.0
        %v454 = vlog2.pop %v453
        %v455 = vmul.f32 %v454, 0.6931472
        %v456 = vmul.f32 -0.5, %v414
        %v457 = vadd.f32 %v456, 1.0
        %v458 = vmul.f32 %v457, %v414
        %v459 = vand.u32 2147483647, %v414
        %vm460 = vcmp.lt.f32.partialorder %v459, 0.0004427343
        %v461 = vsel %vm460, %v458, %v455
        %v462 = vadd.f32 %v415, 1.0
        %v463 = vlog2.pop %v462
        %v464 = vmul.f32 %v463, 0.6931472
        %v465 = vmul.f32 -0.5, %v415
        %v466 = vadd.f32 %v465, 1.0
        %v467 = vmul.f32 %v466, %v415
        %v468 = vand.u32 2147483647, %v415
        %vm469 = vcmp.lt.f32.partialorder %v468, 0.0004427343
        %v470 = vsel %vm469, %v467, %v464
        %v471 = vadd.f32 %v416, 1.0
        %v472 = vlog2.pop %v471
        %v473 = vmul.f32 %v472, 0.6931472
        %v474 = vmul.f32 -0.5, %v416
        %v475 = vadd.f32 %v474, 1.0
        %v476 = vmul.f32 %v475, %v416
        %v477 = vand.u32 2147483647, %v416
        %vm478 = vcmp.lt.f32.partialorder %v477, 0.0004427343
        %v479 = vsel %vm478, %v476, %v473
        %v480 = vmax.f32 %v425, -100.0
        %v481 = vmax.f32 %v434, -100.0
        %v482 = vmax.f32 %v443, -100.0
        %v483 = vmax.f32 %v452, -100.0
        %v484 = vmax.f32 %v461, -100.0
        %v485 = vmax.f32 %v470, -100.0
        %v486 = vmax.f32 %v479, -100.0
        %v487 = vsub.f32 %v403, %v480
        %v488 = vsub.f32 %v404, %v481
        %v489 = vsub.f32 %v405, %v482
        %v490 = vsub.f32 %v406, %v483
        %v491 = vsub.f32 %v407, %v484
        %v492 = vsub.f32 %v408, %v485
        %v493 = vsub.f32 %v409, %v486
        %v494 = vadd.f32 %v480, %v481
        %v495 = vadd.f32 %v494, %v482
        %v496 = vadd.f32 %v495, %v483
        %v497 = vadd.f32 %v496, %v484
        %v498 = vadd.f32 %v497, %v485
        %v499 = vsel %vm341, %v486, 0.0
        %v500 = vadd.f32 %v498, %v499
        %501 = vadd.xlane.f32.xlu0 %v500
        %v502 = vpop.xlane.xlu0 %501
        %v503 = vrot.slane %v502, 4
        %v504 = vadd.f32 %v502, %v503
        %v505 = vrot.slane %v504, 2
        %v506 = vadd.f32 %v504, %v505
        %v507 = vrot.slane %v506, 1
        %v508 = vadd.f32 %v506, %v507
        %s509 = vtos %v508
        %s510 = smul.u32 %s323, 24
        %s511 = scalar_lea.vmem %s203, %s510
        %v512 = vld [vmem:[%s511] sm:$0xff]
        %v513 = vmul.f32 %v512, 36.0
        %v514 = vmul.f32 %v512, 24.0
        %v515 = vmul.f32 %v513, %v513
        %v516 = vmul.f32 %v514, %v514
        %518 = vrot.lane.b32.xlu0 %v516, 127
        %v519 = vpop.permute.xlu0 %518
        %v521 = vadd.f32 %v515, %v519
        %v522 = vsub.f32 0.0, %v521
        %v523 = vmul.f32 %v522, 2.0
        %525 = vset.pattern.permute.xlu0 1
        %526 = vperm.xlu0 %525, %v514
        %v527 = vpop.permute.xlu0 %526
        %v529 = vmul.f32 %v527, %v308
        %v530 = vmul.f32 %v527, %v309
        %v531 = vmul.f32 %v527, %v310
        %v532 = vmul.f32 %v527, %v311
        %v533 = vmul.f32 %v527, %v312
        %v534 = vmul.f32 %v527, %v313
        %v535 = vmul.f32 %v527, %v314
        %v536 = vadd.f32 %v301, %v529
        %v537 = vadd.f32 %v302, %v530
        %v538 = vadd.f32 %v303, %v531
        %v539 = vadd.f32 %v304, %v532
        %v540 = vadd.f32 %v305, %v533
        %v541 = vadd.f32 %v306, %v534
        %v542 = vadd.f32 %v307, %v535
        %544 = vset.pattern.permute.xlu0 0
        %545 = vperm.xlu0 %544, %v513
        %v546 = vpop.permute.xlu0 %545
        %v548 = vmul.f32 %v546, %v315
        %v549 = vmul.f32 %v546, %v316
        %v550 = vmul.f32 %v546, %v317
        %v551 = vmul.f32 %v546, %v318
        %v552 = vmul.f32 %v546, %v319
        %v553 = vmul.f32 %v546, %v320
        %v554 = vmul.f32 %v546, %v321
        %v555 = vadd.f32 %v536, %v548
        %v556 = vadd.f32 %v537, %v549
        %v557 = vadd.f32 %v538, %v550
        %v558 = vadd.f32 %v539, %v551
        %v559 = vadd.f32 %v540, %v552
        %v560 = vadd.f32 %v541, %v553
        %v561 = vadd.f32 %v542, %v554
        %563 = vset.pattern.permute.xlu0 0
        %564 = vperm.xlu0 %563, %v523
        %v565 = vpop.permute.xlu0 %564
        %v567 = vadd.f32 %v555, %v565
        %v568 = vadd.f32 %v556, %v565
        %v569 = vadd.f32 %v557, %v565
        %v570 = vadd.f32 %v558, %v565
        %v571 = vadd.f32 %v559, %v565
        %v572 = vadd.f32 %v560, %v565
        %v573 = vadd.f32 %v561, %v565
        %v574 = vmul.f32 %v567, 1.442695
        %v575 = vpow.pop %v574
        %v576 = vmul.f32 %v568, 1.442695
        %v577 = vpow.pop %v576
        %v578 = vmul.f32 %v569, 1.442695
        %v579 = vpow.pop %v578
        %v580 = vmul.f32 %v570, 1.442695
        %v581 = vpow.pop %v580
        %v582 = vmul.f32 %v571, 1.442695
        %v583 = vpow.pop %v582
        %v584 = vmul.f32 %v572, 1.442695
        %v585 = vpow.pop %v584
        %v586 = vmul.f32 %v573, 1.442695
        %v587 = vpow.pop %v586
        %v588 = vmul.f32 %v575, %v487
        %v589 = vmul.f32 %v577, %v488
        %v590 = vmul.f32 %v579, %v489
        %v591 = vmul.f32 %v581, %v490
        %v592 = vmul.f32 %v583, %v491
        %v593 = vmul.f32 %v585, %v492
        %v594 = vmul.f32 %v587, %v493
        %v595 = vadd.f32 %v588, %v589
        %v596 = vadd.f32 %v595, %v590
        %v597 = vadd.f32 %v596, %v591
        %v598 = vadd.f32 %v597, %v592
        %v599 = vadd.f32 %v598, %v593
        %v600 = vsel %vm341, %v594, 0.0
        %v601 = vadd.f32 %v599, %v600
        %602 = vadd.xlane.f32.xlu0 %v601
        %v603 = vpop.xlane.xlu0 %602
        %v604 = vadd.f32 %v575, %v577
        %v605 = vadd.f32 %v604, %v579
        %v606 = vadd.f32 %v605, %v581
        %v607 = vadd.f32 %v606, %v583
        %v608 = vadd.f32 %v607, %v585
        %v609 = vsel %vm341, %v587, 0.0
        %v610 = vadd.f32 %v608, %v609
        %611 = vadd.xlane.f32.xlu0 %v610
        %v612 = vpop.xlane.xlu0 %611
        %v613 = vrcp.pop %v612
        %v614 = vmul.f32 %v603, %v613
        %vm615 = vcmask 7168
        %v616 = vsel %vm615, %v614, 0.0
        %617 = vadd.xlane.f32.xlu0 %v616
        %v618 = vpop.xlane.xlu0 %617
        %v619 = vrot.slane %v618, 4
        %v620 = vadd.f32 %v618, %v619
        %v621 = vrot.slane %v620, 2
        %v622 = vadd.f32 %v620, %v621
        %v623 = vrot.slane %v622, 1
        %v624 = vadd.f32 %v622, %v623
        %s625 = vtos %v624
        %s626 = sadd.f32 %s625, 0.0
        %s627 = sadd.s32 8, %s510
        %s628 = scalar_lea.vmem %s203, %s627
        %v629 = vld [vmem:[%s628] sm:$0xff]
        %v630 = vmul.f32 %v629, 36.0
        %v631 = vmul.f32 %v629, 24.0
        %v632 = vmul.f32 %v630, %v630
        %v633 = vmul.f32 %v631, %v631
        %635 = vrot.lane.b32.xlu0 %v633, 127
        %v636 = vpop.permute.xlu0 %635
        %v638 = vadd.f32 %v632, %v636
        %v639 = vsub.f32 0.0, %v638
        %v640 = vmul.f32 %v639, 2.0
        %642 = vset.pattern.permute.xlu0 1
        %643 = vperm.xlu0 %642, %v631
        %v644 = vpop.permute.xlu0 %643
        %v646 = vmul.f32 %v644, %v308
        %v647 = vmul.f32 %v644, %v309
        %v648 = vmul.f32 %v644, %v310
        %v649 = vmul.f32 %v644, %v311
        %v650 = vmul.f32 %v644, %v312
        %v651 = vmul.f32 %v644, %v313
        %v652 = vmul.f32 %v644, %v314
        %v653 = vadd.f32 %v301, %v646
        %v654 = vadd.f32 %v302, %v647
        %v655 = vadd.f32 %v303, %v648
        %v656 = vadd.f32 %v304, %v649
        %v657 = vadd.f32 %v305, %v650
        %v658 = vadd.f32 %v306, %v651
        %v659 = vadd.f32 %v307, %v652
        %661 = vset.pattern.permute.xlu0 0
        %662 = vperm.xlu0 %661, %v630
        %v663 = vpop.permute.xlu0 %662
        %v665 = vmul.f32 %v663, %v315
        %v666 = vmul.f32 %v663, %v316
        %v667 = vmul.f32 %v663, %v317
        %v668 = vmul.f32 %v663, %v318
        %v669 = vmul.f32 %v663, %v319
        %v670 = vmul.f32 %v663, %v320
        %v671 = vmul.f32 %v663, %v321
        %v672 = vadd.f32 %v653, %v665
        %v673 = vadd.f32 %v654, %v666
        %v674 = vadd.f32 %v655, %v667
        %v675 = vadd.f32 %v656, %v668
        %v676 = vadd.f32 %v657, %v669
        %v677 = vadd.f32 %v658, %v670
        %v678 = vadd.f32 %v659, %v671
        %680 = vset.pattern.permute.xlu0 0
        %681 = vperm.xlu0 %680, %v640
        %v682 = vpop.permute.xlu0 %681
        %v684 = vadd.f32 %v672, %v682
        %v685 = vadd.f32 %v673, %v682
        %v686 = vadd.f32 %v674, %v682
        %v687 = vadd.f32 %v675, %v682
        %v688 = vadd.f32 %v676, %v682
        %v689 = vadd.f32 %v677, %v682
        %v690 = vadd.f32 %v678, %v682
        %v691 = vmul.f32 %v684, 1.442695
        %v692 = vpow.pop %v691
        %v693 = vmul.f32 %v685, 1.442695
        %v694 = vpow.pop %v693
        %v695 = vmul.f32 %v686, 1.442695
        %v696 = vpow.pop %v695
        %v697 = vmul.f32 %v687, 1.442695
        %v698 = vpow.pop %v697
        %v699 = vmul.f32 %v688, 1.442695
        %v700 = vpow.pop %v699
        %v701 = vmul.f32 %v689, 1.442695
        %v702 = vpow.pop %v701
        %v703 = vmul.f32 %v690, 1.442695
        %v704 = vpow.pop %v703
        %v705 = vmul.f32 %v692, %v487
        %v706 = vmul.f32 %v694, %v488
        %v707 = vmul.f32 %v696, %v489
        %v708 = vmul.f32 %v698, %v490
        %v709 = vmul.f32 %v700, %v491
        %v710 = vmul.f32 %v702, %v492
        %v711 = vmul.f32 %v704, %v493
        %v712 = vadd.f32 %v705, %v706
        %v713 = vadd.f32 %v712, %v707
        %v714 = vadd.f32 %v713, %v708
        %v715 = vadd.f32 %v714, %v709
        %v716 = vadd.f32 %v715, %v710
        %v717 = vsel %vm341, %v711, 0.0
        %v718 = vadd.f32 %v716, %v717
        %719 = vadd.xlane.f32.xlu0 %v718
        %v720 = vpop.xlane.xlu0 %719
        %v721 = vadd.f32 %v692, %v694
        %v722 = vadd.f32 %v721, %v696
        %v723 = vadd.f32 %v722, %v698
        %v724 = vadd.f32 %v723, %v700
        %v725 = vadd.f32 %v724, %v702
        %v726 = vsel %vm341, %v704, 0.0
        %v727 = vadd.f32 %v725, %v726
        %728 = vadd.xlane.f32.xlu0 %v727
        %v729 = vpop.xlane.xlu0 %728
        %v730 = vrcp.pop %v729
        %v731 = vmul.f32 %v720, %v730
        %v732 = vsel %vm615, %v731, 0.0
        %733 = vadd.xlane.f32.xlu0 %v732
        %v734 = vpop.xlane.xlu0 %733
        %v735 = vrot.slane %v734, 4
        %v736 = vadd.f32 %v734, %v735
        %v737 = vrot.slane %v736, 2
        %v738 = vadd.f32 %v736, %v737
        %v739 = vrot.slane %v738, 1
        %v740 = vadd.f32 %v738, %v739
        %s741 = vtos %v740
        %s742 = sadd.f32 %s626, %s741
        %s743 = sadd.s32 16, %s510
        %s744 = scalar_lea.vmem %s203, %s743
        %v745 = vld [vmem:[%s744] sm:$0xff]
        %v746 = vmul.f32 %v745, 36.0
        %v747 = vmul.f32 %v745, 24.0
        %v748 = vmul.f32 %v746, %v746
        %v749 = vmul.f32 %v747, %v747
        %751 = vrot.lane.b32.xlu0 %v749, 127
        %v752 = vpop.permute.xlu0 %751
        %v754 = vadd.f32 %v748, %v752
        %v755 = vsub.f32 0.0, %v754
        %v756 = vmul.f32 %v755, 2.0
        %758 = vset.pattern.permute.xlu0 1
        %759 = vperm.xlu0 %758, %v747
        %v760 = vpop.permute.xlu0 %759
        %v762 = vmul.f32 %v760, %v308
        %v763 = vmul.f32 %v760, %v309
        %v764 = vmul.f32 %v760, %v310
        %v765 = vmul.f32 %v760, %v311
        %v766 = vmul.f32 %v760, %v312
        %v767 = vmul.f32 %v760, %v313
        %v768 = vmul.f32 %v760, %v314
        %v769 = vadd.f32 %v301, %v762
        %v770 = vadd.f32 %v302, %v763
        %v771 = vadd.f32 %v303, %v764
        %v772 = vadd.f32 %v304, %v765
        %v773 = vadd.f32 %v305, %v766
        %v774 = vadd.f32 %v306, %v767
        %v775 = vadd.f32 %v307, %v768
        %777 = vset.pattern.permute.xlu0 0
        %778 = vperm.xlu0 %777, %v746
        %v779 = vpop.permute.xlu0 %778
        %v781 = vmul.f32 %v779, %v315
        %v782 = vmul.f32 %v779, %v316
        %v783 = vmul.f32 %v779, %v317
        %v784 = vmul.f32 %v779, %v318
        %v785 = vmul.f32 %v779, %v319
        %v786 = vmul.f32 %v779, %v320
        %v787 = vmul.f32 %v779, %v321
        %v788 = vadd.f32 %v769, %v781
        %v789 = vadd.f32 %v770, %v782
        %v790 = vadd.f32 %v771, %v783
        %v791 = vadd.f32 %v772, %v784
        %v792 = vadd.f32 %v773, %v785
        %v793 = vadd.f32 %v774, %v786
        %v794 = vadd.f32 %v775, %v787
        %796 = vset.pattern.permute.xlu0 0
        %797 = vperm.xlu0 %796, %v756
        %v798 = vpop.permute.xlu0 %797
        %v800 = vadd.f32 %v788, %v798
        %v801 = vadd.f32 %v789, %v798
        %v802 = vadd.f32 %v790, %v798
        %v803 = vadd.f32 %v791, %v798
        %v804 = vadd.f32 %v792, %v798
        %v805 = vadd.f32 %v793, %v798
        %v806 = vadd.f32 %v794, %v798
        %v807 = vmul.f32 %v800, 1.442695
        %v808 = vpow.pop %v807
        %v809 = vmul.f32 %v801, 1.442695
        %v810 = vpow.pop %v809
        %v811 = vmul.f32 %v802, 1.442695
        %v812 = vpow.pop %v811
        %v813 = vmul.f32 %v803, 1.442695
        %v814 = vpow.pop %v813
        %v815 = vmul.f32 %v804, 1.442695
        %v816 = vpow.pop %v815
        %v817 = vmul.f32 %v805, 1.442695
        %v818 = vpow.pop %v817
        %v819 = vmul.f32 %v806, 1.442695
        %v820 = vpow.pop %v819
        %v821 = vmul.f32 %v808, %v487
        %v822 = vmul.f32 %v810, %v488
        %v823 = vmul.f32 %v812, %v489
        %v824 = vmul.f32 %v814, %v490
        %v825 = vmul.f32 %v816, %v491
        %v826 = vmul.f32 %v818, %v492
        %v827 = vmul.f32 %v820, %v493
        %v828 = vadd.f32 %v821, %v822
        %v829 = vadd.f32 %v828, %v823
        %v830 = vadd.f32 %v829, %v824
        %v831 = vadd.f32 %v830, %v825
        %v832 = vadd.f32 %v831, %v826
        %v833 = vsel %vm341, %v827, 0.0
        %v834 = vadd.f32 %v832, %v833
        %835 = vadd.xlane.f32.xlu0 %v834
        %v836 = vpop.xlane.xlu0 %835
        %v837 = vadd.f32 %v808, %v810
        %v838 = vadd.f32 %v837, %v812
        %v839 = vadd.f32 %v838, %v814
        %v840 = vadd.f32 %v839, %v816
        %v841 = vadd.f32 %v840, %v818
        %v842 = vsel %vm341, %v820, 0.0
        %v843 = vadd.f32 %v841, %v842
        %844 = vadd.xlane.f32.xlu0 %v843
        %v845 = vpop.xlane.xlu0 %844
        %v846 = vrcp.pop %v845
        %v847 = vmul.f32 %v836, %v846
        %v848 = vsel %vm615, %v847, 0.0
        %849 = vadd.xlane.f32.xlu0 %v848
        %v850 = vpop.xlane.xlu0 %849
        %v851 = vrot.slane %v850, 4
        %v852 = vadd.f32 %v850, %v851
        %v853 = vrot.slane %v852, 2
        %v854 = vadd.f32 %v852, %v853
        %v855 = vrot.slane %v854, 1
        %v856 = vadd.f32 %v854, %v855
        %s857 = vtos %v856
        %s858 = sadd.f32 %s742, %s857
        %s859 = ssub.f32 0.0, %s858
        %s860 = smul.f32 %s509, 3.0
        %s861 = ssub.f32 %s859, %s860
        %s862 = smul.f32 %s861, 4.822531e-05
        %s863 = sadd.f32 %s328, %s862
      $region37: #{_pi_loss_impl.1} parent=31 // loop_footer
        %s327 = sadd.s32 1, %s323
      $region38: #{_pi_loss_impl.1} parent=31 // loop_footer_branch
        %322 = sbr.rel target = $region34
      $region39: #{_pi_loss_impl.1} parent=31 // loop_exit
        _
      %v864 = vrcp.pop 18.0
      %v865 = vmul.f32 %v237, %v864
      %v866 = vmul.f32 %v238, %v864
      %v867 = vfloor.f32 %v865
      %v868 = vfloor.f32 %v866
      %v869 = vmul.f32 %v867, 18.0
      %v870 = vmul.f32 %v868, 18.0
      %v871 = vsub.f32 %v230, %v869
      %v872 = vsub.f32 %v231, %v870
      %v873 = vmul.f32 %v867, %v867
      %v874 = vmul.f32 %v868, %v868
      %v875 = vmul.f32 %v871, %v871
      %v876 = vmul.f32 %v872, %v872
      %v877 = vadd.f32 %v873, %v875
      %v878 = vadd.f32 %v874, %v876
      %v879 = vsub.f32 0.0, %v877
      %v880 = vsub.f32 0.0, %v878
      %v881 = vmul.f32 %v879, 8.0
      %v882 = vmul.f32 %v880, 8.0
      %v883 = vmul.f32 %v867, 16.0
      %v884 = vmul.f32 %v868, 16.0
      %v885 = vmul.f32 %v871, 16.0
      %v886 = vmul.f32 %v872, 16.0
      loop: start=0, step=1, limit=2
      $region40: #{_pi_loss_impl.1} parent=31 // loop_pre_header
        _
      $region41: #{_pi_loss_impl.1} parent=31 // loop_header
        %s888 = sphi 0, %s892
        %p889 = scmp.ge.s32.totalorder %s888, 2
        %s893 = sphi %s328, %s1163
      $region42: #{_pi_loss_impl.1} parent=31 // loop_header_branch
        %891 = sbr.rel (%p889) target = $region46
      $region43: #{_pi_loss_impl.1} parent=31 // loop_body
        %s894 = smul.u32 %s888, 2
        %s895 = smul.addr %s894, 8
        %s896 = scalar_lea.vmem %s217, %s895
        %v897 = vld [vmem:[%s896] sm:$0xff]
        %v898 = vld [vmem:[%s896 + $0x8] sm:$0xff]
        %vm899 = vcmask 719872
        %v900 = vsel %vm899, %v898, -inf
        %v901 = vmax.f32 %v897, %v900
        %902 = vmax.xlane.f32.xlu0 %v901
        %v903 = vpop.xlane.xlu0 %902
        %v904 = vsub.f32 %v897, %v903
        %v905 = vsub.f32 %v898, %v903
        %v906 = vmul.f32 %v904, 1.442695
        %v907 = vpow.pop %v906
        %v908 = vmul.f32 %v905, 1.442695
        %v909 = vpow.pop %v908
        %v910 = vsel %vm899, %v909, 0.0
        %v911 = vadd.f32 %v907, %v910
        %912 = vadd.xlane.f32.xlu0 %v911
        %v913 = vpop.xlane.xlu0 %912
        %v914 = vlog2.pop %v913
        %v915 = vmul.f32 %v914, 0.6931472
        %v916 = vsub.f32 %v904, %v915
        %v917 = vsub.f32 %v905, %v915
        %v918 = vrcp.pop %v913
        %v919 = vmul.f32 %v907, %v918
        %v920 = vmul.f32 %v909, %v918
        %v921 = vmin.f32 %v919, 1.0
        %v922 = vmin.f32 %v920, 1.0
        %v923 = vmax.f32 %v916, -100.0
        %v924 = vmax.f32 %v917, -100.0
        %v925 = vsub.f32 0.0, %v921
        %v926 = vsub.f32 0.0, %v922
        %v927 = vadd.f32 %v925, 1.0
        %v928 = vlog2.pop %v927
        %v929 = vmul.f32 %v928, 0.6931472
        %v930 = vmul.f32 -0.5, %v925
        %v931 = vadd.f32 %v930, 1.0
        %v932 = vmul.f32 %v931, %v925
        %v933 = vand.u32 2147483647, %v925
        %vm934 = vcmp.lt.f32.partialorder %v933, 0.0004427343
        %v935 = vsel %vm934, %v932, %v929
        %v936 = vadd.f32 %v926, 1.0
        %v937 = vlog2.pop %v936
        %v938 = vmul.f32 %v937, 0.6931472
        %v939 = vmul.f32 -0.5, %v926
        %v940 = vadd.f32 %v939, 1.0
        %v941 = vmul.f32 %v940, %v926
        %v942 = vand.u32 2147483647, %v926
        %vm943 = vcmp.lt.f32.partialorder %v942, 0.0004427343
        %v944 = vsel %vm943, %v941, %v938
        %v945 = vmax.f32 %v935, -100.0
        %v946 = vmax.f32 %v944, -100.0
        %v947 = vsub.f32 %v923, %v945
        %v948 = vsub.f32 %v924, %v946
        %v949 = vsel %vm899, %v946, 0.0
        %v950 = vadd.f32 %v945, %v949
        %951 = vadd.xlane.f32.xlu0 %v950
        %v952 = vpop.xlane.xlu0 %951
        %v953 = vrot.slane %v952, 4
        %v954 = vadd.f32 %v952, %v953
        %v955 = vrot.slane %v954, 2
        %v956 = vadd.f32 %v954, %v955
        %v957 = vrot.slane %v956, 1
        %v958 = vadd.f32 %v956, %v957
        %s959 = vtos %v958
        %s960 = smul.u32 %s888, 24
        %s961 = scalar_lea.vmem %s203, %s960
        %v962 = vld [vmem:[%s961] sm:$0xff]
        %v963 = vmul.f32 %v962, 18.0
        %v964 = vmul.f32 %v962, 12.0
        %v965 = vmul.f32 %v963, %v963
        %v966 = vmul.f32 %v964, %v964
        %968 = vrot.lane.b32.xlu0 %v966, 127
        %v969 = vpop.permute.xlu0 %968
        %v971 = vadd.f32 %v965, %v969
        %v972 = vsub.f32 0.0, %v971
        %v973 = vmul.f32 %v972, 8.0
        %975 = vset.pattern.permute.xlu0 1
        %976 = vperm.xlu0 %975, %v964
        %v977 = vpop.permute.xlu0 %976
        %v979 = vmul.f32 %v977, %v883
        %v980 = vmul.f32 %v977, %v884
        %v981 = vadd.f32 %v881, %v979
        %v982 = vadd.f32 %v882, %v980
        %984 = vset.pattern.permute.xlu0 0
        %985 = vperm.xlu0 %984, %v963
        %v986 = vpop.permute.xlu0 %985
        %v988 = vmul.f32 %v986, %v885
        %v989 = vmul.f32 %v986, %v886
        %v990 = vadd.f32 %v981, %v988
        %v991 = vadd.f32 %v982, %v989
        %993 = vset.pattern.permute.xlu0 0
        %994 = vperm.xlu0 %993, %v973
        %v995 = vpop.permute.xlu0 %994
        %v997 = vadd.f32 %v990, %v995
        %v998 = vadd.f32 %v991, %v995
        %v999 = vmul.f32 %v997, 1.442695
        %v1000 = vpow.pop %v999
        %v1001 = vmul.f32 %v998, 1.442695
        %v1002 = vpow.pop %v1001
        %v1003 = vmul.f32 %v1000, %v947
        %v1004 = vmul.f32 %v1002, %v948
        %v1005 = vsel %vm899, %v1004, 0.0
        %v1006 = vadd.f32 %v1003, %v1005
        %1007 = vadd.xlane.f32.xlu0 %v1006
        %v1008 = vpop.xlane.xlu0 %1007
        %v1009 = vsel %vm899, %v1002, 0.0
        %v1010 = vadd.f32 %v1000, %v1009
        %1011 = vadd.xlane.f32.xlu0 %v1010
        %v1012 = vpop.xlane.xlu0 %1011
        %v1013 = vrcp.pop %v1012
        %v1014 = vmul.f32 %v1008, %v1013
        %vm1015 = vcmask 7168
        %v1016 = vsel %vm1015, %v1014, 0.0
        %1017 = vadd.xlane.f32.xlu0 %v1016
        %v1018 = vpop.xlane.xlu0 %1017
        %v1019 = vrot.slane %v1018, 4
        %v1020 = vadd.f32 %v1018, %v1019
        %v1021 = vrot.slane %v1020, 2
        %v1022 = vadd.f32 %v1020, %v1021
        %v1023 = vrot.slane %v1022, 1
        %v1024 = vadd.f32 %v1022, %v1023
        %s1025 = vtos %v1024
        %s1026 = sadd.f32 %s1025, 0.0
        %s1027 = sadd.s32 8, %s960
        %s1028 = scalar_lea.vmem %s203, %s1027
        %v1029 = vld [vmem:[%s1028] sm:$0xff]
        %v1030 = vmul.f32 %v1029, 18.0
        %v1031 = vmul.f32 %v1029, 12.0
        %v1032 = vmul.f32 %v1030, %v1030
        %v1033 = vmul.f32 %v1031, %v1031
        %1035 = vrot.lane.b32.xlu0 %v1033, 127
        %v1036 = vpop.permute.xlu0 %1035
        %v1038 = vadd.f32 %v1032, %v1036
        %v1039 = vsub.f32 0.0, %v1038
        %v1040 = vmul.f32 %v1039, 8.0
        %1042 = vset.pattern.permute.xlu0 1
        %1043 = vperm.xlu0 %1042, %v1031
        %v1044 = vpop.permute.xlu0 %1043
        %v1046 = vmul.f32 %v1044, %v883
        %v1047 = vmul.f32 %v1044, %v884
        %v1048 = vadd.f32 %v881, %v1046
        %v1049 = vadd.f32 %v882, %v1047
        %1051 = vset.pattern.permute.xlu0 0
        %1052 = vperm.xlu0 %1051, %v1030
        %v1053 = vpop.permute.xlu0 %1052
        %v1055 = vmul.f32 %v1053, %v885
        %v1056 = vmul.f32 %v1053, %v886
        %v1057 = vadd.f32 %v1048, %v1055
        %v1058 = vadd.f32 %v1049, %v1056
        %1060 = vset.pattern.permute.xlu0 0
        %1061 = vperm.xlu0 %1060, %v1040
        %v1062 = vpop.permute.xlu0 %1061
        %v1064 = vadd.f32 %v1057, %v1062
        %v1065 = vadd.f32 %v1058, %v1062
        %v1066 = vmul.f32 %v1064, 1.442695
        %v1067 = vpow.pop %v1066
        %v1068 = vmul.f32 %v1065, 1.442695
        %v1069 = vpow.pop %v1068
        %v1070 = vmul.f32 %v1067, %v947
        %v1071 = vmul.f32 %v1069, %v948
        %v1072 = vsel %vm899, %v1071, 0.0
        %v1073 = vadd.f32 %v1070, %v1072
        %1074 = vadd.xlane.f32.xlu0 %v1073
        %v1075 = vpop.xlane.xlu0 %1074
        %v1076 = vsel %vm899, %v1069, 0.0
        %v1077 = vadd.f32 %v1067, %v1076
        %1078 = vadd.xlane.f32.xlu0 %v1077
        %v1079 = vpop.xlane.xlu0 %1078
        %v1080 = vrcp.pop %v1079
        %v1081 = vmul.f32 %v1075, %v1080
        %v1082 = vsel %vm1015, %v1081, 0.0
        %1083 = vadd.xlane.f32.xlu0 %v1082
        %v1084 = vpop.xlane.xlu0 %1083
        %v1085 = vrot.slane %v1084, 4
        %v1086 = vadd.f32 %v1084, %v1085
        %v1087 = vrot.slane %v1086, 2
        %v1088 = vadd.f32 %v1086, %v1087
        %v1089 = vrot.slane %v1088, 1
        %v1090 = vadd.f32 %v1088, %v1089
        %s1091 = vtos %v1090
        %s1092 = sadd.f32 %s1026, %s1091
        %s1093 = sadd.s32 16, %s960
        %s1094 = scalar_lea.vmem %s203, %s1093
        %v1095 = vld [vmem:[%s1094] sm:$0xff]
        %v1096 = vmul.f32 %v1095, 18.0
        %v1097 = vmul.f32 %v1095, 12.0
        %v1098 = vmul.f32 %v1096, %v1096
        %v1099 = vmul.f32 %v1097, %v1097
        %1101 = vrot.lane.b32.xlu0 %v1099, 127
        %v1102 = vpop.permute.xlu0 %1101
        %v1104 = vadd.f32 %v1098, %v1102
        %v1105 = vsub.f32 0.0, %v1104
        %v1106 = vmul.f32 %v1105, 8.0
        %1108 = vset.pattern.permute.xlu0 1
        %1109 = vperm.xlu0 %1108, %v1097
        %v1110 = vpop.permute.xlu0 %1109
        %v1112 = vmul.f32 %v1110, %v883
        %v1113 = vmul.f32 %v1110, %v884
        %v1114 = vadd.f32 %v881, %v1112
        %v1115 = vadd.f32 %v882, %v1113
        %1117 = vset.pattern.permute.xlu0 0
        %1118 = vperm.xlu0 %1117, %v1096
        %v1119 = vpop.permute.xlu0 %1118
        %v1121 = vmul.f32 %v1119, %v885
        %v1122 = vmul.f32 %v1119, %v886
        %v1123 = vadd.f32 %v1114, %v1121
        %v1124 = vadd.f32 %v1115, %v1122
        %1126 = vset.pattern.permute.xlu0 0
        %1127 = vperm.xlu0 %1126, %v1106
        %v1128 = vpop.permute.xlu0 %1127
        %v1130 = vadd.f32 %v1123, %v1128
        %v1131 = vadd.f32 %v1124, %v1128
        %v1132 = vmul.f32 %v1130, 1.442695
        %v1133 = vpow.pop %v1132
        %v1134 = vmul.f32 %v1131, 1.442695
        %v1135 = vpow.pop %v1134
        %v1136 = vmul.f32 %v1133, %v947
        %v1137 = vmul.f32 %v1135, %v948
        %v1138 = vsel %vm899, %v1137, 0.0
        %v1139 = vadd.f32 %v1136, %v1138
        %1140 = vadd.xlane.f32.xlu0 %v1139
        %v1141 = vpop.xlane.xlu0 %1140
        %v1142 = vsel %vm899, %v1135, 0.0
        %v1143 = vadd.f32 %v1133, %v1142
        %1144 = vadd.xlane.f32.xlu0 %v1143
        %v1145 = vpop.xlane.xlu0 %1144
        %v1146 = vrcp.pop %v1145
        %v1147 = vmul.f32 %v1141, %v1146
        %v1148 = vsel %vm1015, %v1147, 0.0
        %1149 = vadd.xlane.f32.xlu0 %v1148
        %v1150 = vpop.xlane.xlu0 %1149
        %v1151 = vrot.slane %v1150, 4
        %v1152 = vadd.f32 %v1150, %v1151
        %v1153 = vrot.slane %v1152, 2
        %v1154 = vadd.f32 %v1152, %v1153
        %v1155 = vrot.slane %v1154, 1
        %v1156 = vadd.f32 %v1154, %v1155
        %s1157 = vtos %v1156
        %s1158 = sadd.f32 %s1092, %s1157
        %s1159 = ssub.f32 0.0, %s1158
        %s1160 = smul.f32 %s959, 3.0
        %s1161 = ssub.f32 %s1159, %s1160
        %s1162 = smul.f32 %s1161, 0.00019290124
        %s1163 = sadd.f32 %s893, %s1162
      $region44: #{_pi_loss_impl.1} parent=31 // loop_footer
        %s892 = sadd.s32 1, %s888
      $region45: #{_pi_loss_impl.1} parent=31 // loop_footer_branch
        %887 = sbr.rel target = $region41
      $region46: #{_pi_loss_impl.1} parent=31 // loop_exit
        _
      %vm1164 = vcmp.eq.s32.totalorder %v223, 0
      %v1165 = vstv %s893
      %v1166 = vsel %vm1164, %v1165, 0.0
      %1167 = vst [vmem:[%s221] sm:$0x1] %v1166
      %p1168 = scmp.lt.s32.totalorder %s14, 1
      %s1169 = scalar_select %p1168, %s14, 1
      %s1170 = scalar_lea.vmem %s3, %s1169
      // Predicated region
      $region47: #{_pi_loss_impl.1} parent=31 // pred_check
        %p1171 = pneg %p110
      $region48: #{_pi_loss_impl.1} parent=31 // pred_check_branch
        %1173 = sbr.rel (%p1171) target = $region50
      $region49: #{_pi_loss_impl.1} parent=31 // pred_region
        _
      $region50: #{_pi_loss_impl.1} parent=31 // pred_fallthru
        _
    $region32: #{_pi_loss_impl.1} parent=5 // pred_fallthru
      _
    %p1174 = scmp.le.s32.totalorder 2, %s9
    // Predicated region
    $region51: #{_pi_loss_impl.1} parent=5 // pred_check
      %p1175 = pneg %p1174
    $region52: #{_pi_loss_impl.1} parent=5 // pred_check_branch
      %1177 = sbr.rel (%p1175) target = $region54
    $region53: #{_pi_loss_impl.1} parent=5 // pred_region
      %s1178 = ssub.s32 %s9, 2
      // Predicated region
      $region55: #{_pi_loss_impl.1} parent=53 // pred_check
        %p1179 = pneg %p116
      $region56: #{_pi_loss_impl.1} parent=53 // pred_check_branch
        %1181 = sbr.rel (%p1179) target = $region58
      $region57: #{_pi_loss_impl.1} parent=53 // pred_region
        %p1182 = scmp.lt.s32.totalorder %s15, 1
        %s1183 = scalar_select %p1182, %s15, 1
        %s1184 = scalar_lea.vmem %s3, %s1183
      $region58: #{_pi_loss_impl.1} parent=53 // pred_fallthru
        _
    $region54: #{_pi_loss_impl.1} parent=5 // pred_fallthru
      _
  $region6: #{_pi_loss_impl.1} parent=0 // loop_footer
    %s13 = sadd.s32 1, %s9
  $region7: #{_pi_loss_impl.1} parent=0 // loop_footer_branch
    %8 = sbr.rel target = $region3
  $region8: #{_pi_loss_impl.1} parent=0 // loop_exit
    _

</llo_original>
